<compile_context>
chip_gen: v6e
topology: v6e:2x2x1
jax: 0.10.0
libtpu: 0.0.40
codegen_flags: <defaults>
</compile_context>

<pallas_src>
import functools

import jax
import jax.numpy as jnp
from jax.experimental import pallas as pl
from jax.experimental.pallas import tpu as pltpu


# ----------------------------------------------------------------------------
# Fused Pallas kernel: all GRU layers + final FC in one call.
# ----------------------------------------------------------------------------
def fused_gru_fc_kernel(num_layers, T, B, x_ref, *refs):
    """Fused forward.

    x_ref : (T*B, F)  time-major flattened input (row index = t*B + b)
    per layer l (4 refs each):
        wih    : (F_in, 3H)  input->hidden weights, pre-transposed, gates r|z|n
        whh    : (H, 3H)     hidden->hidden weights, pre-transposed
        b_fold : (1, 3H)     b_ih with b_hr/b_hz folded in (n slice = b_in only)
        b_hn   : (1, H)      hidden bias of the n gate (kept inside r * (...))
    then: fc_w (H, C), fc_b (1, C)
    outputs: out_ref (B, C)
    scratch: seq_scratch (T*B, H)  inter-layer activations (unused if 1 layer)
    """
    fc_w_ref = refs[4 * num_layers]
    fc_b_ref = refs[4 * num_layers + 1]
    out_ref = refs[4 * num_layers + 2]
    seq_scratch = refs[4 * num_layers + 3]

    layer_in = x_ref[...]                                   # (T*B, F_in)
    h = None
    for l in range(num_layers):
        wih = refs[4 * l + 0][...]                          # (F_in, 3H)  hoisted
        whh = refs[4 * l + 1][...]                          # (H, 3H)     hoisted
        b_fold = refs[4 * l + 2][...]                       # (1, 3H)     hoisted
        b_hn = refs[4 * l + 3][...]                         # (1, H)      hoisted
        H = whh.shape[0]
        last_layer = (l + 1 == num_layers)

        # Input projection for the whole sequence: one MXU matmul, off the
        # recurrent dependency chain.
        gx_all = jnp.dot(layer_in, wih,
                         preferred_element_type=jnp.float32) + b_fold  # (T*B, 3H)

        h = jnp.zeros((B, H), jnp.float32)
        # Fully unrolled time loop (T is static and tiny) -> LLO scheduler sees
        # across steps.  For large T, switch to lax.fori_loop(..., unroll=True)
        # with a (T*B, H) scratch carry.
        for t in range(T):
            gx = gx_all[t * B:(t + 1) * B, :]               # (B, 3H) static slice
            gh = jnp.dot(h, whh, preferred_element_type=jnp.float32)   # (B, 3H)
            r = jax.nn.sigmoid(gx[:, 0:H] + gh[:, 0:H])
            z = jax.nn.sigmoid(gx[:, H:2 * H] + gh[:, H:2 * H])
            n = jnp.tanh(gx[:, 2 * H:3 * H] + r * (gh[:, 2 * H:3 * H] + b_hn))
            h = (1.0 - z) * n + z * h
            if not last_layer:
                # Off the critical path: only non-top layers need the sequence.
                seq_scratch[t * B:(t + 1) * B, :] = h
        if not last_layer:
            layer_in = seq_scratch[...]                     # (T*B, H)

    # FC epilogue on the top layer's final hidden state.
    out_ref[...] = jnp.dot(h, fc_w_ref[...],
                           preferred_element_type=jnp.float32) + fc_b_ref[...]


# ----------------------------------------------------------------------------
# Wrappers
# ----------------------------------------------------------------------------
_VMEM = pl.BlockSpec(memory_space=pltpu.MemorySpace.VMEM)


def prepare_params(gru_params, fc_w, fc_b):
    """One-time (outside jit) weight transpose/cast + bias folding."""
    prepped = []
    for (w_ih, w_hh, b_ih, b_hh) in gru_params:
        H = w_hh.shape[1]
        wih_t = jnp.asarray(w_ih, jnp.float32).T                     # (F_in, 3H)
        whh_t = jnp.asarray(w_hh, jnp.float32).T                     # (H, 3H)
        b_fold = jnp.concatenate(
            [b_ih[:2 * H] + b_hh[:2 * H], b_ih[2 * H:]]
        ).reshape(1, 3 * H).astype(jnp.float32)                      # (1, 3H)
        b_hn = jnp.asarray(b_hh[2 * H:], jnp.float32).reshape(1, H)  # (1, H)
        prepped.append((wih_t, whh_t, b_fold, b_hn))
    fc_w_t = jnp.asarray(fc_w, jnp.float32).T                        # (H, C)
    fc_b2 = jnp.asarray(fc_b, jnp.float32).reshape(1, -1)            # (1, C)
    return tuple(prepped), fc_w_t, fc_b2


@jax.jit
def gru_predictor_forward(x_btf, prepped_gru, fc_w_t, fc_b2):
    """x_btf: (batch, seq, features) -> class scores (batch, num_classes)."""
    B, T, F = x_btf.shape
    num_layers = len(prepped_gru)
    H = prepped_gru[0][1].shape[0]
    C = fc_w_t.shape[1]

    # batch_first -> time-major, then flatten to 2-D so all in-kernel matmuls
    # and slices are plain 2-D ops.
    x2 = jnp.transpose(x_btf, (1, 0, 2)).reshape(T * B, F).astype(jnp.float32)

    flat = [w for layer in prepped_gru for w in layer]
    kernel = functools.partial(fused_gru_fc_kernel, num_layers, T, B)

    # NOTE(v7x scaling): everything is kept resident in VMEM with no grid,
    # which is fine at these sizes; for long sequences / big batches add a
    # grid over T (arbitrary) and/or batch (parallel) with BlockSpecs.
    return pl.pallas_call(
        kernel,
        out_shape=jax.ShapeDtypeStruct((B, C), jnp.float32),
        in_specs=[_VMEM] * (1 + len(flat) + 2),
        out_specs=_VMEM,
        scratch_shapes=[pltpu.VMEM((T * B, H), jnp.float32)],
    )(x2, *flat, fc_w_t, fc_b2)


# ----------------------------------------------------------------------------
# Pure-JAX reference (correctness check)
# ----------------------------------------------------------------------------
def gru_predictor_ref(x_btf, gru_params, fc_w, fc_b):
    B, T, _ = x_btf.shape
    layer_in = x_btf
    h = None
    for (w_ih, w_hh, b_ih, b_hh) in gru_params:
        H = w_hh.shape[1]
        h = jnp.zeros((B, H), jnp.float32)
        outs = []
        for t in range(T):
            gx = layer_in[:, t, :] @ w_ih.T + b_ih
            gh = h @ w_hh.T + b_hh
            r = jax.nn.sigmoid(gx[:, 0:H] + gh[:, 0:H])
            z = jax.nn.sigmoid(gx[:, H:2 * H] + gh[:, H:2 * H])
            n = jnp.tanh(gx[:, 2 * H:3 * H] + r * gh[:, 2 * H:3 * H])
            h = (1.0 - z) * n + z * h
            outs.append(h)
        layer_in = jnp.stack(outs, axis=1)
    return h @ fc_w.T + fc_b


# ----------------------------------------------------------------------------
# Parameter init (PyTorch-style uniform(-1/sqrt(H), 1/sqrt(H)), deterministic)
# ----------------------------------------------------------------------------
def init_params(key, num_classes, input_size, hidden_size, num_layers):
    H = hidden_size
    bound = 1.0 / jnp.sqrt(jnp.float32(H))
    gru_params = []
    for layer in range(num_layers):
        in_dim = input_size if layer == 0 else H
        key, k1, k2, k3, k4 = jax.random.split(key, 5)
        w_ih = jax.random.uniform(k1, (3 * H, in_dim), jnp.float32, -bound, bound)
        w_hh = jax.random.uniform(k2, (3 * H, H), jnp.float32, -bound, bound)
        b_ih = jax.random.uniform(k3, (3 * H,), jnp.float32, -bound, bound)
        b_hh = jax.random.uniform(k4, (3 * H,), jnp.float32, -bound, bound)
        gru_params.append((w_ih, w_hh, b_ih, b_hh))
    key, k5, k6 = jax.random.split(key, 3)
    fc_w = jax.random.uniform(k5, (num_classes, H), jnp.float32, -bound, bound)
    fc_b = jax.random.uniform(k6, (num_classes,), jnp.float32, -bound, bound)
    return gru_params, fc_w, fc_b


# ----------------------------------------------------------------------------
if __name__ == "__main__":
    num_classes = 4
    input_size = 8      # num_features
    hidden_size = 32
    num_layers = 2
    batch = 2
    seq_len = 8

    key = jax.random.PRNGKey(0)
    key, xkey = jax.random.split(key)
    x = jax.random.normal(xkey, (batch, seq_len, input_size), jnp.float32)

    gru_params, fc_w, fc_b = init_params(key, num_classes, input_size,
                                         hidden_size, num_layers)

    # One-time weight prep (outside jit): transpose, cast, fold biases.
    prepped_gru, fc_w_t, fc_b2 = prepare_params(gru_params, fc_w, fc_b)

    out = gru_predictor_forward(x, prepped_gru, fc_w_t, fc_b2)
    out = jax.block_until_ready(out)

    ref = gru_predictor_ref(x, gru_params, fc_w, fc_b)
    assert out.shape == (batch, num_classes), out.shape
    assert jnp.allclose(out, ref, atol=1e-5, rtol=1e-5), \
        f"max abs err {jnp.max(jnp.abs(out - ref))}"

    print("KERNEL_OK")
</pallas_src>

<mosaic_0001>
module attributes {stable_mosaic.version = 11 : i64} {
  func.func @fused_gru_fc_kernel(%arg0: memref<16x8xf32, #tpu.memory_space<vmem>>, %arg1: memref<8x96xf32, #tpu.memory_space<vmem>>, %arg2: memref<32x96xf32, #tpu.memory_space<vmem>>, %arg3: memref<1x96xf32, #tpu.memory_space<vmem>>, %arg4: memref<1x32xf32, #tpu.memory_space<vmem>>, %arg5: memref<32x96xf32, #tpu.memory_space<vmem>>, %arg6: memref<32x96xf32, #tpu.memory_space<vmem>>, %arg7: memref<1x96xf32, #tpu.memory_space<vmem>>, %arg8: memref<1x32xf32, #tpu.memory_space<vmem>>, %arg9: memref<32x4xf32, #tpu.memory_space<vmem>>, %arg10: memref<1x4xf32, #tpu.memory_space<vmem>>, %arg11: memref<2x4xf32, #tpu.memory_space<vmem>>, %arg12: memref<16x32xf32, #tpu.memory_space<vmem>>) attributes {dimension_semantics = [], scalar_prefetch = 0 : i64, scratch_operands = 1 : i64, tpu.core_type = #tpu.core_type<tc>} {
    %c0 = arith.constant 0 : index
    %c0_0 = arith.constant 0 : index
    %0 = vector.load %arg0[%c0, %c0_0] : memref<16x8xf32, #tpu.memory_space<vmem>>, vector<16x8xf32>
    %c0_1 = arith.constant 0 : index
    %c0_2 = arith.constant 0 : index
    %1 = vector.load %arg1[%c0_1, %c0_2] : memref<8x96xf32, #tpu.memory_space<vmem>>, vector<8x96xf32>
    %c0_3 = arith.constant 0 : index
    %c0_4 = arith.constant 0 : index
    %2 = vector.load %arg2[%c0_3, %c0_4] : memref<32x96xf32, #tpu.memory_space<vmem>>, vector<32x96xf32>
    %c0_5 = arith.constant 0 : index
    %c0_6 = arith.constant 0 : index
    %3 = vector.load %arg3[%c0_5, %c0_6] : memref<1x96xf32, #tpu.memory_space<vmem>>, vector<1x96xf32>
    %c0_7 = arith.constant 0 : index
    %c0_8 = arith.constant 0 : index
    %4 = vector.load %arg4[%c0_7, %c0_8] : memref<1x32xf32, #tpu.memory_space<vmem>>, vector<1x32xf32>
    %cst = arith.constant dense<0.000000e+00> : vector<16x96xf32>
    %5 = tpu.matmul %0, %1, %cst {dimension_numbers = #tpu.dot_dimension_numbers<[1], [0], [0], [1], [0, 0, 1, 1], [], []>} : vector<16x8xf32>, vector<8x96xf32>, vector<16x96xf32> -> vector<16x96xf32>
    %6 = vector.broadcast %3 : vector<1x96xf32> to vector<16x96xf32>
    %7 = arith.addf %5, %6 : vector<16x96xf32>
    %cst_9 = arith.constant 0.000000e+00 : f32
    %8 = vector.broadcast %cst_9 : f32 to vector<2x32xf32>
    %9 = vector.extract_strided_slice %7 {offsets = [0, 0], sizes = [2, 96], strides = [1, 1]} : vector<16x96xf32> to vector<2x96xf32>
    %cst_10 = arith.constant dense<0.000000e+00> : vector<2x96xf32>
    %10 = tpu.matmul %8, %2, %cst_10 {dimension_numbers = #tpu.dot_dimension_numbers<[1], [0], [0], [1], [0, 0, 1, 1], [], []>} : vector<2x32xf32>, vector<32x96xf32>, vector<2x96xf32> -> vector<2x96xf32>
    %11 = vector.extract_strided_slice %9 {offsets = [0, 0], sizes = [2, 32], strides = [1, 1]} : vector<2x96xf32> to vector<2x32xf32>
    %12 = vector.extract_strided_slice %10 {offsets = [0, 0], sizes = [2, 32], strides = [1, 1]} : vector<2x96xf32> to vector<2x32xf32>
    %13 = arith.addf %11, %12 : vector<2x32xf32>
    %14 = arith.negf %13 : vector<2x32xf32>
    %15 = math.exp %14 : vector<2x32xf32>
    %cst_11 = arith.constant 1.000000e+00 : f32
    %16 = vector.broadcast %cst_11 : f32 to vector<2x32xf32>
    %17 = arith.addf %16, %15 : vector<2x32xf32>
    %18 = arith.divf %16, %17 : vector<2x32xf32>
    %19 = vector.extract_strided_slice %9 {offsets = [0, 32], sizes = [2, 32], strides = [1, 1]} : vector<2x96xf32> to vector<2x32xf32>
    %20 = vector.extract_strided_slice %10 {offsets = [0, 32], sizes = [2, 32], strides = [1, 1]} : vector<2x96xf32> to vector<2x32xf32>
    %21 = arith.addf %19, %20 : vector<2x32xf32>
    %22 = arith.negf %21 : vector<2x32xf32>
    %23 = math.exp %22 : vector<2x32xf32>
    %cst_12 = arith.constant 1.000000e+00 : f32
    %24 = vector.broadcast %cst_12 : f32 to vector<2x32xf32>
    %25 = arith.addf %24, %23 : vector<2x32xf32>
    %26 = arith.divf %24, %25 : vector<2x32xf32>
    %27 = vector.extract_strided_slice %9 {offsets = [0, 64], sizes = [2, 32], strides = [1, 1]} : vector<2x96xf32> to vector<2x32xf32>
    %28 = vector.extract_strided_slice %10 {offsets = [0, 64], sizes = [2, 32], strides = [1, 1]} : vector<2x96xf32> to vector<2x32xf32>
    %29 = vector.broadcast %4 : vector<1x32xf32> to vector<2x32xf32>
    %30 = arith.addf %28, %29 : vector<2x32xf32>
    %31 = arith.mulf %18, %30 : vector<2x32xf32>
    %32 = arith.addf %27, %31 : vector<2x32xf32>
    %33 = math.tanh %32 : vector<2x32xf32>
    %cst_13 = arith.constant 1.000000e+00 : f32
    %34 = vector.broadcast %cst_13 : f32 to vector<2x32xf32>
    %35 = arith.subf %34, %26 : vector<2x32xf32>
    %36 = arith.mulf %35, %33 : vector<2x32xf32>
    %37 = arith.mulf %26, %8 : vector<2x32xf32>
    %38 = arith.addf %36, %37 : vector<2x32xf32>
    %c0_14 = arith.constant 0 : index
    %c0_15 = arith.constant 0 : index
    %39 = vector.load %arg12[%c0_14, %c0_15] : memref<16x32xf32, #tpu.memory_space<vmem>>, vector<2x32xf32>
    tpu.vector_store %arg12[%c0_14, %c0_15], %38 {strides = array<i32>} : memref<16x32xf32, #tpu.memory_space<vmem>>, vector<2x32xf32>,
    %40 = vector.extract_strided_slice %7 {offsets = [2, 0], sizes = [2, 96], strides = [1, 1]} : vector<16x96xf32> to vector<2x96xf32>
    %cst_16 = arith.constant dense<0.000000e+00> : vector<2x96xf32>
    %41 = tpu.matmul %38, %2, %cst_16 {dimension_numbers = #tpu.dot_dimension_numbers<[1], [0], [0], [1], [0, 0, 1, 1], [], []>} : vector<2x32xf32>, vector<32x96xf32>, vector<2x96xf32> -> vector<2x96xf32>
    %42 = vector.extract_strided_slice %40 {offsets = [0, 0], sizes = [2, 32], strides = [1, 1]} : vector<2x96xf32> to vector<2x32xf32>
    %43 = vector.extract_strided_slice %41 {offsets = [0, 0], sizes = [2, 32], strides = [1, 1]} : vector<2x96xf32> to vector<2x32xf32>
    %44 = arith.addf %42, %43 : vector<2x32xf32>
    %45 = arith.negf %44 : vector<2x32xf32>
    %46 = math.exp %45 : vector<2x32xf32>
    %cst_17 = arith.constant 1.000000e+00 : f32
    %47 = vector.broadcast %cst_17 : f32 to vector<2x32xf32>
    %48 = arith.addf %47, %46 : vector<2x32xf32>
    %49 = arith.divf %47, %48 : vector<2x32xf32>
    %50 = vector.extract_strided_slice %40 {offsets = [0, 32], sizes = [2, 32], strides = [1, 1]} : vector<2x96xf32> to vector<2x32xf32>
    %51 = vector.extract_strided_slice %41 {offsets = [0, 32], sizes = [2, 32], strides = [1, 1]} : vector<2x96xf32> to vector<2x32xf32>
    %52 = arith.addf %50, %51 : vector<2x32xf32>
    %53 = arith.negf %52 : vector<2x32xf32>
    %54 = math.exp %53 : vector<2x32xf32>
    %cst_18 = arith.constant 1.000000e+00 : f32
    %55 = vector.broadcast %cst_18 : f32 to vector<2x32xf32>
    %56 = arith.addf %55, %54 : vector<2x32xf32>
    %57 = arith.divf %55, %56 : vector<2x32xf32>
    %58 = vector.extract_strided_slice %40 {offsets = [0, 64], sizes = [2, 32], strides = [1, 1]} : vector<2x96xf32> to vector<2x32xf32>
    %59 = vector.extract_strided_slice %41 {offsets = [0, 64], sizes = [2, 32], strides = [1, 1]} : vector<2x96xf32> to vector<2x32xf32>
    %60 = vector.broadcast %4 : vector<1x32xf32> to vector<2x32xf32>
    %61 = arith.addf %59, %60 : vector<2x32xf32>
    %62 = arith.mulf %49, %61 : vector<2x32xf32>
    %63 = arith.addf %58, %62 : vector<2x32xf32>
    %64 = math.tanh %63 : vector<2x32xf32>
    %cst_19 = arith.constant 1.000000e+00 : f32
    %65 = vector.broadcast %cst_19 : f32 to vector<2x32xf32>
    %66 = arith.subf %65, %57 : vector<2x32xf32>
    %67 = arith.mulf %66, %64 : vector<2x32xf32>
    %68 = arith.mulf %57, %38 : vector<2x32xf32>
    %69 = arith.addf %67, %68 : vector<2x32xf32>
    %c2 = arith.constant 2 : index
    %c0_20 = arith.constant 0 : index
    %70 = vector.load %arg12[%c2, %c0_20] : memref<16x32xf32, #tpu.memory_space<vmem>>, vector<2x32xf32>
    tpu.vector_store %arg12[%c2, %c0_20], %69 {strides = array<i32>} : memref<16x32xf32, #tpu.memory_space<vmem>>, vector<2x32xf32>,
    %71 = vector.extract_strided_slice %7 {offsets = [4, 0], sizes = [2, 96], strides = [1, 1]} : vector<16x96xf32> to vector<2x96xf32>
    %cst_21 = arith.constant dense<0.000000e+00> : vector<2x96xf32>
    %72 = tpu.matmul %69, %2, %cst_21 {dimension_numbers = #tpu.dot_dimension_numbers<[1], [0], [0], [1], [0, 0, 1, 1], [], []>} : vector<2x32xf32>, vector<32x96xf32>, vector<2x96xf32> -> vector<2x96xf32>
    %73 = vector.extract_strided_slice %71 {offsets = [0, 0], sizes = [2, 32], strides = [1, 1]} : vector<2x96xf32> to vector<2x32xf32>
    %74 = vector.extract_strided_slice %72 {offsets = [0, 0], sizes = [2, 32], strides = [1, 1]} : vector<2x96xf32> to vector<2x32xf32>
    %75 = arith.addf %73, %74 : vector<2x32xf32>
    %76 = arith.negf %75 : vector<2x32xf32>
    %77 = math.exp %76 : vector<2x32xf32>
    %cst_22 = arith.constant 1.000000e+00 : f32
    %78 = vector.broadcast %cst_22 : f32 to vector<2x32xf32>
    %79 = arith.addf %78, %77 : vector<2x32xf32>
    %80 = arith.divf %78, %79 : vector<2x32xf32>
    %81 = vector.extract_strided_slice %71 {offsets = [0, 32], sizes = [2, 32], strides = [1, 1]} : vector<2x96xf32> to vector<2x32xf32>
    %82 = vector.extract_strided_slice %72 {offsets = [0, 32], sizes = [2, 32], strides = [1, 1]} : vector<2x96xf32> to vector<2x32xf32>
    %83 = arith.addf %81, %82 : vector<2x32xf32>
    %84 = arith.negf %83 : vector<2x32xf32>
    %85 = math.exp %84 : vector<2x32xf32>
    %cst_23 = arith.constant 1.000000e+00 : f32
    %86 = vector.broadcast %cst_23 : f32 to vector<2x32xf32>
    %87 = arith.addf %86, %85 : vector<2x32xf32>
    %88 = arith.divf %86, %87 : vector<2x32xf32>
    %89 = vector.extract_strided_slice %71 {offsets = [0, 64], sizes = [2, 32], strides = [1, 1]} : vector<2x96xf32> to vector<2x32xf32>
    %90 = vector.extract_strided_slice %72 {offsets = [0, 64], sizes = [2, 32], strides = [1, 1]} : vector<2x96xf32> to vector<2x32xf32>
    %91 = vector.broadcast %4 : vector<1x32xf32> to vector<2x32xf32>
    %92 = arith.addf %90, %91 : vector<2x32xf32>
    %93 = arith.mulf %80, %92 : vector<2x32xf32>
    %94 = arith.addf %89, %93 : vector<2x32xf32>
    %95 = math.tanh %94 : vector<2x32xf32>
    %cst_24 = arith.constant 1.000000e+00 : f32
    %96 = vector.broadcast %cst_24 : f32 to vector<2x32xf32>
    %97 = arith.subf %96, %88 : vector<2x32xf32>
    %98 = arith.mulf %97, %95 : vector<2x32xf32>
    %99 = arith.mulf %88, %69 : vector<2x32xf32>
    %100 = arith.addf %98, %99 : vector<2x32xf32>
    %c4 = arith.constant 4 : index
    %c0_25 = arith.constant 0 : index
    %101 = vector.load %arg12[%c4, %c0_25] : memref<16x32xf32, #tpu.memory_space<vmem>>, vector<2x32xf32>
    tpu.vector_store %arg12[%c4, %c0_25], %100 {strides = array<i32>} : memref<16x32xf32, #tpu.memory_space<vmem>>, vector<2x32xf32>,
    %102 = vector.extract_strided_slice %7 {offsets = [6, 0], sizes = [2, 96], strides = [1, 1]} : vector<16x96xf32> to vector<2x96xf32>
    %cst_26 = arith.constant dense<0.000000e+00> : vector<2x96xf32>
    %103 = tpu.matmul %100, %2, %cst_26 {dimension_numbers = #tpu.dot_dimension_numbers<[1], [0], [0], [1], [0, 0, 1, 1], [], []>} : vector<2x32xf32>, vector<32x96xf32>, vector<2x96xf32> -> vector<2x96xf32>
    %104 = vector.extract_strided_slice %102 {offsets = [0, 0], sizes = [2, 32], strides = [1, 1]} : vector<2x96xf32> to vector<2x32xf32>
    %105 = vector.extract_strided_slice %103 {offsets = [0, 0], sizes = [2, 32], strides = [1, 1]} : vector<2x96xf32> to vector<2x32xf32>
    %106 = arith.addf %104, %105 : vector<2x32xf32>
    %107 = arith.negf %106 : vector<2x32xf32>
    %108 = math.exp %107 : vector<2x32xf32>
    %cst_27 = arith.constant 1.000000e+00 : f32
    %109 = vector.broadcast %cst_27 : f32 to vector<2x32xf32>
    %110 = arith.addf %109, %108 : vector<2x32xf32>
    %111 = arith.divf %109, %110 : vector<2x32xf32>
    %112 = vector.extract_strided_slice %102 {offsets = [0, 32], sizes = [2, 32], strides = [1, 1]} : vector<2x96xf32> to vector<2x32xf32>
    %113 = vector.extract_strided_slice %103 {offsets = [0, 32], sizes = [2, 32], strides = [1, 1]} : vector<2x96xf32> to vector<2x32xf32>
    %114 = arith.addf %112, %113 : vector<2x32xf32>
    %115 = arith.negf %114 : vector<2x32xf32>
    %116 = math.exp %115 : vector<2x32xf32>
    %cst_28 = arith.constant 1.000000e+00 : f32
    %117 = vector.broadcast %cst_28 : f32 to vector<2x32xf32>
    %118 = arith.addf %117, %116 : vector<2x32xf32>
    %119 = arith.divf %117, %118 : vector<2x32xf32>
    %120 = vector.extract_strided_slice %102 {offsets = [0, 64], sizes = [2, 32], strides = [1, 1]} : vector<2x96xf32> to vector<2x32xf32>
    %121 = vector.extract_strided_slice %103 {offsets = [0, 64], sizes = [2, 32], strides = [1, 1]} : vector<2x96xf32> to vector<2x32xf32>
    %122 = vector.broadcast %4 : vector<1x32xf32> to vector<2x32xf32>
    %123 = arith.addf %121, %122 : vector<2x32xf32>
    %124 = arith.mulf %111, %123 : vector<2x32xf32>
    %125 = arith.addf %120, %124 : vector<2x32xf32>
    %126 = math.tanh %125 : vector<2x32xf32>
    %cst_29 = arith.constant 1.000000e+00 : f32
    %127 = vector.broadcast %cst_29 : f32 to vector<2x32xf32>
    %128 = arith.subf %127, %119 : vector<2x32xf32>
    %129 = arith.mulf %128, %126 : vector<2x32xf32>
    %130 = arith.mulf %119, %100 : vector<2x32xf32>
    %131 = arith.addf %129, %130 : vector<2x32xf32>
    %c6 = arith.constant 6 : index
    %c0_30 = arith.constant 0 : index
    %132 = vector.load %arg12[%c6, %c0_30] : memref<16x32xf32, #tpu.memory_space<vmem>>, vector<2x32xf32>
    tpu.vector_store %arg12[%c6, %c0_30], %131 {strides = array<i32>} : memref<16x32xf32, #tpu.memory_space<vmem>>, vector<2x32xf32>,
    %133 = vector.extract_strided_slice %7 {offsets = [8, 0], sizes = [2, 96], strides = [1, 1]} : vector<16x96xf32> to vector<2x96xf32>
    %cst_31 = arith.constant dense<0.000000e+00> : vector<2x96xf32>
    %134 = tpu.matmul %131, %2, %cst_31 {dimension_numbers = #tpu.dot_dimension_numbers<[1], [0], [0], [1], [0, 0, 1, 1], [], []>} : vector<2x32xf32>, vector<32x96xf32>, vector<2x96xf32> -> vector<2x96xf32>
    %135 = vector.extract_strided_slice %133 {offsets = [0, 0], sizes = [2, 32], strides = [1, 1]} : vector<2x96xf32> to vector<2x32xf32>
    %136 = vector.extract_strided_slice %134 {offsets = [0, 0], sizes = [2, 32], strides = [1, 1]} : vector<2x96xf32> to vector<2x32xf32>
    %137 = arith.addf %135, %136 : vector<2x32xf32>
    %138 = arith.negf %137 : vector<2x32xf32>
    %139 = math.exp %138 : vector<2x32xf32>
    %cst_32 = arith.constant 1.000000e+00 : f32
    %140 = vector.broadcast %cst_32 : f32 to vector<2x32xf32>
    %141 = arith.addf %140, %139 : vector<2x32xf32>
    %142 = arith.divf %140, %141 : vector<2x32xf32>
    %143 = vector.extract_strided_slice %133 {offsets = [0, 32], sizes = [2, 32], strides = [1, 1]} : vector<2x96xf32> to vector<2x32xf32>
    %144 = vector.extract_strided_slice %134 {offsets = [0, 32], sizes = [2, 32], strides = [1, 1]} : vector<2x96xf32> to vector<2x32xf32>
    %145 = arith.addf %143, %144 : vector<2x32xf32>
    %146 = arith.negf %145 : vector<2x32xf32>
    %147 = math.exp %146 : vector<2x32xf32>
    %cst_33 = arith.constant 1.000000e+00 : f32
    %148 = vector.broadcast %cst_33 : f32 to vector<2x32xf32>
    %149 = arith.addf %148, %147 : vector<2x32xf32>
    %150 = arith.divf %148, %149 : vector<2x32xf32>
    %151 = vector.extract_strided_slice %133 {offsets = [0, 64], sizes = [2, 32], strides = [1, 1]} : vector<2x96xf32> to vector<2x32xf32>
    %152 = vector.extract_strided_slice %134 {offsets = [0, 64], sizes = [2, 32], strides = [1, 1]} : vector<2x96xf32> to vector<2x32xf32>
    %153 = vector.broadcast %4 : vector<1x32xf32> to vector<2x32xf32>
    %154 = arith.addf %152, %153 : vector<2x32xf32>
    %155 = arith.mulf %142, %154 : vector<2x32xf32>
    %156 = arith.addf %151, %155 : vector<2x32xf32>
    %157 = math.tanh %156 : vector<2x32xf32>
    %cst_34 = arith.constant 1.000000e+00 : f32
    %158 = vector.broadcast %cst_34 : f32 to vector<2x32xf32>
    %159 = arith.subf %158, %150 : vector<2x32xf32>
    %160 = arith.mulf %159, %157 : vector<2x32xf32>
    %161 = arith.mulf %150, %131 : vector<2x32xf32>
    %162 = arith.addf %160, %161 : vector<2x32xf32>
    %c8 = arith.constant 8 : index
    %c0_35 = arith.constant 0 : index
    %163 = vector.load %arg12[%c8, %c0_35] : memref<16x32xf32, #tpu.memory_space<vmem>>, vector<2x32xf32>
    tpu.vector_store %arg12[%c8, %c0_35], %162 {strides = array<i32>} : memref<16x32xf32, #tpu.memory_space<vmem>>, vector<2x32xf32>,
    %164 = vector.extract_strided_slice %7 {offsets = [10, 0], sizes = [2, 96], strides = [1, 1]} : vector<16x96xf32> to vector<2x96xf32>
    %cst_36 = arith.constant dense<0.000000e+00> : vector<2x96xf32>
    %165 = tpu.matmul %162, %2, %cst_36 {dimension_numbers = #tpu.dot_dimension_numbers<[1], [0], [0], [1], [0, 0, 1, 1], [], []>} : vector<2x32xf32>, vector<32x96xf32>, vector<2x96xf32> -> vector<2x96xf32>
    %166 = vector.extract_strided_slice %164 {offsets = [0, 0], sizes = [2, 32], strides = [1, 1]} : vector<2x96xf32> to vector<2x32xf32>
    %167 = vector.extract_strided_slice %165 {offsets = [0, 0], sizes = [2, 32], strides = [1, 1]} : vector<2x96xf32> to vector<2x32xf32>
    %168 = arith.addf %166, %167 : vector<2x32xf32>
    %169 = arith.negf %168 : vector<2x32xf32>
    %170 = math.exp %169 : vector<2x32xf32>
    %cst_37 = arith.constant 1.000000e+00 : f32
    %171 = vector.broadcast %cst_37 : f32 to vector<2x32xf32>
    %172 = arith.addf %171, %170 : vector<2x32xf32>
    %173 = arith.divf %171, %172 : vector<2x32xf32>
    %174 = vector.extract_strided_slice %164 {offsets = [0, 32], sizes = [2, 32], strides = [1, 1]} : vector<2x96xf32> to vector<2x32xf32>
    %175 = vector.extract_strided_slice %165 {offsets = [0, 32], sizes = [2, 32], strides = [1, 1]} : vector<2x96xf32> to vector<2x32xf32>
    %176 = arith.addf %174, %175 : vector<2x32xf32>
    %177 = arith.negf %176 : vector<2x32xf32>
    %178 = math.exp %177 : vector<2x32xf32>
    %cst_38 = arith.constant 1.000000e+00 : f32
    %179 = vector.broadcast %cst_38 : f32 to vector<2x32xf32>
    %180 = arith.addf %179, %178 : vector<2x32xf32>
    %181 = arith.divf %179, %180 : vector<2x32xf32>
    %182 = vector.extract_strided_slice %164 {offsets = [0, 64], sizes = [2, 32], strides = [1, 1]} : vector<2x96xf32> to vector<2x32xf32>
    %183 = vector.extract_strided_slice %165 {offsets = [0, 64], sizes = [2, 32], strides = [1, 1]} : vector<2x96xf32> to vector<2x32xf32>
    %184 = vector.broadcast %4 : vector<1x32xf32> to vector<2x32xf32>
    %185 = arith.addf %183, %184 : vector<2x32xf32>
    %186 = arith.mulf %173, %185 : vector<2x32xf32>
    %187 = arith.addf %182, %186 : vector<2x32xf32>
    %188 = math.tanh %187 : vector<2x32xf32>
    %cst_39 = arith.constant 1.000000e+00 : f32
    %189 = vector.broadcast %cst_39 : f32 to vector<2x32xf32>
    %190 = arith.subf %189, %181 : vector<2x32xf32>
    %191 = arith.mulf %190, %188 : vector<2x32xf32>
    %192 = arith.mulf %181, %162 : vector<2x32xf32>
    %193 = arith.addf %191, %192 : vector<2x32xf32>
    %c10 = arith.constant 10 : index
    %c0_40 = arith.constant 0 : index
    %194 = vector.load %arg12[%c10, %c0_40] : memref<16x32xf32, #tpu.memory_space<vmem>>, vector<2x32xf32>
    tpu.vector_store %arg12[%c10, %c0_40], %193 {strides = array<i32>} : memref<16x32xf32, #tpu.memory_space<vmem>>, vector<2x32xf32>,
    %195 = vector.extract_strided_slice %7 {offsets = [12, 0], sizes = [2, 96], strides = [1, 1]} : vector<16x96xf32> to vector<2x96xf32>
    %cst_41 = arith.constant dense<0.000000e+00> : vector<2x96xf32>
    %196 = tpu.matmul %193, %2, %cst_41 {dimension_numbers = #tpu.dot_dimension_numbers<[1], [0], [0], [1], [0, 0, 1, 1], [], []>} : vector<2x32xf32>, vector<32x96xf32>, vector<2x96xf32> -> vector<2x96xf32>
    %197 = vector.extract_strided_slice %195 {offsets = [0, 0], sizes = [2, 32], strides = [1, 1]} : vector<2x96xf32> to vector<2x32xf32>
    %198 = vector.extract_strided_slice %196 {offsets = [0, 0], sizes = [2, 32], strides = [1, 1]} : vector<2x96xf32> to vector<2x32xf32>
    %199 = arith.addf %197, %198 : vector<2x32xf32>
    %200 = arith.negf %199 : vector<2x32xf32>
    %201 = math.exp %200 : vector<2x32xf32>
    %cst_42 = arith.constant 1.000000e+00 : f32
    %202 = vector.broadcast %cst_42 : f32 to vector<2x32xf32>
    %203 = arith.addf %202, %201 : vector<2x32xf32>
    %204 = arith.divf %202, %203 : vector<2x32xf32>
    %205 = vector.extract_strided_slice %195 {offsets = [0, 32], sizes = [2, 32], strides = [1, 1]} : vector<2x96xf32> to vector<2x32xf32>
    %206 = vector.extract_strided_slice %196 {offsets = [0, 32], sizes = [2, 32], strides = [1, 1]} : vector<2x96xf32> to vector<2x32xf32>
    %207 = arith.addf %205, %206 : vector<2x32xf32>
    %208 = arith.negf %207 : vector<2x32xf32>
    %209 = math.exp %208 : vector<2x32xf32>
    %cst_43 = arith.constant 1.000000e+00 : f32
    %210 = vector.broadcast %cst_43 : f32 to vector<2x32xf32>
    %211 = arith.addf %210, %209 : vector<2x32xf32>
    %212 = arith.divf %210, %211 : vector<2x32xf32>
    %213 = vector.extract_strided_slice %195 {offsets = [0, 64], sizes = [2, 32], strides = [1, 1]} : vector<2x96xf32> to vector<2x32xf32>
    %214 = vector.extract_strided_slice %196 {offsets = [0, 64], sizes = [2, 32], strides = [1, 1]} : vector<2x96xf32> to vector<2x32xf32>
    %215 = vector.broadcast %4 : vector<1x32xf32> to vector<2x32xf32>
    %216 = arith.addf %214, %215 : vector<2x32xf32>
    %217 = arith.mulf %204, %216 : vector<2x32xf32>
    %218 = arith.addf %213, %217 : vector<2x32xf32>
    %219 = math.tanh %218 : vector<2x32xf32>
    %cst_44 = arith.constant 1.000000e+00 : f32
    %220 = vector.broadcast %cst_44 : f32 to vector<2x32xf32>
    %221 = arith.subf %220, %212 : vector<2x32xf32>
    %222 = arith.mulf %221, %219 : vector<2x32xf32>
    %223 = arith.mulf %212, %193 : vector<2x32xf32>
    %224 = arith.addf %222, %223 : vector<2x32xf32>
    %c12 = arith.constant 12 : index
    %c0_45 = arith.constant 0 : index
    %225 = vector.load %arg12[%c12, %c0_45] : memref<16x32xf32, #tpu.memory_space<vmem>>, vector<2x32xf32>
    tpu.vector_store %arg12[%c12, %c0_45], %224 {strides = array<i32>} : memref<16x32xf32, #tpu.memory_space<vmem>>, vector<2x32xf32>,
    %226 = vector.extract_strided_slice %7 {offsets = [14, 0], sizes = [2, 96], strides = [1, 1]} : vector<16x96xf32> to vector<2x96xf32>
    %cst_46 = arith.constant dense<0.000000e+00> : vector<2x96xf32>
    %227 = tpu.matmul %224, %2, %cst_46 {dimension_numbers = #tpu.dot_dimension_numbers<[1], [0], [0], [1], [0, 0, 1, 1], [], []>} : vector<2x32xf32>, vector<32x96xf32>, vector<2x96xf32> -> vector<2x96xf32>
    %228 = vector.extract_strided_slice %226 {offsets = [0, 0], sizes = [2, 32], strides = [1, 1]} : vector<2x96xf32> to vector<2x32xf32>
    %229 = vector.extract_strided_slice %227 {offsets = [0, 0], sizes = [2, 32], strides = [1, 1]} : vector<2x96xf32> to vector<2x32xf32>
    %230 = arith.addf %228, %229 : vector<2x32xf32>
    %231 = arith.negf %230 : vector<2x32xf32>
    %232 = math.exp %231 : vector<2x32xf32>
    %cst_47 = arith.constant 1.000000e+00 : f32
    %233 = vector.broadcast %cst_47 : f32 to vector<2x32xf32>
    %234 = arith.addf %233, %232 : vector<2x32xf32>
    %235 = arith.divf %233, %234 : vector<2x32xf32>
    %236 = vector.extract_strided_slice %226 {offsets = [0, 32], sizes = [2, 32], strides = [1, 1]} : vector<2x96xf32> to vector<2x32xf32>
    %237 = vector.extract_strided_slice %227 {offsets = [0, 32], sizes = [2, 32], strides = [1, 1]} : vector<2x96xf32> to vector<2x32xf32>
    %238 = arith.addf %236, %237 : vector<2x32xf32>
    %239 = arith.negf %238 : vector<2x32xf32>
    %240 = math.exp %239 : vector<2x32xf32>
    %cst_48 = arith.constant 1.000000e+00 : f32
    %241 = vector.broadcast %cst_48 : f32 to vector<2x32xf32>
    %242 = arith.addf %241, %240 : vector<2x32xf32>
    %243 = arith.divf %241, %242 : vector<2x32xf32>
    %244 = vector.extract_strided_slice %226 {offsets = [0, 64], sizes = [2, 32], strides = [1, 1]} : vector<2x96xf32> to vector<2x32xf32>
    %245 = vector.extract_strided_slice %227 {offsets = [0, 64], sizes = [2, 32], strides = [1, 1]} : vector<2x96xf32> to vector<2x32xf32>
    %246 = vector.broadcast %4 : vector<1x32xf32> to vector<2x32xf32>
    %247 = arith.addf %245, %246 : vector<2x32xf32>
    %248 = arith.mulf %235, %247 : vector<2x32xf32>
    %249 = arith.addf %244, %248 : vector<2x32xf32>
    %250 = math.tanh %249 : vector<2x32xf32>
    %cst_49 = arith.constant 1.000000e+00 : f32
    %251 = vector.broadcast %cst_49 : f32 to vector<2x32xf32>
    %252 = arith.subf %251, %243 : vector<2x32xf32>
    %253 = arith.mulf %252, %250 : vector<2x32xf32>
    %254 = arith.mulf %243, %224 : vector<2x32xf32>
    %255 = arith.addf %253, %254 : vector<2x32xf32>
    %c14 = arith.constant 14 : index
    %c0_50 = arith.constant 0 : index
    %256 = vector.load %arg12[%c14, %c0_50] : memref<16x32xf32, #tpu.memory_space<vmem>>, vector<2x32xf32>
    tpu.vector_store %arg12[%c14, %c0_50], %255 {strides = array<i32>} : memref<16x32xf32, #tpu.memory_space<vmem>>, vector<2x32xf32>,
    %c0_51 = arith.constant 0 : index
    %c0_52 = arith.constant 0 : index
    %257 = vector.load %arg12[%c0_51, %c0_52] : memref<16x32xf32, #tpu.memory_space<vmem>>, vector<16x32xf32>
    %c0_53 = arith.constant 0 : index
    %c0_54 = arith.constant 0 : index
    %258 = vector.load %arg5[%c0_53, %c0_54] : memref<32x96xf32, #tpu.memory_space<vmem>>, vector<32x96xf32>
    %c0_55 = arith.constant 0 : index
    %c0_56 = arith.constant 0 : index
    %259 = vector.load %arg6[%c0_55, %c0_56] : memref<32x96xf32, #tpu.memory_space<vmem>>, vector<32x96xf32>
    %c0_57 = arith.constant 0 : index
    %c0_58 = arith.constant 0 : index
    %260 = vector.load %arg7[%c0_57, %c0_58] : memref<1x96xf32, #tpu.memory_space<vmem>>, vector<1x96xf32>
    %c0_59 = arith.constant 0 : index
    %c0_60 = arith.constant 0 : index
    %261 = vector.load %arg8[%c0_59, %c0_60] : memref<1x32xf32, #tpu.memory_space<vmem>>, vector<1x32xf32>
    %cst_61 = arith.constant dense<0.000000e+00> : vector<16x96xf32>
    %262 = tpu.matmul %257, %258, %cst_61 {dimension_numbers = #tpu.dot_dimension_numbers<[1], [0], [0], [1], [0, 0, 1, 1], [], []>} : vector<16x32xf32>, vector<32x96xf32>, vector<16x96xf32> -> vector<16x96xf32>
    %263 = vector.broadcast %260 : vector<1x96xf32> to vector<16x96xf32>
    %264 = arith.addf %262, %263 : vector<16x96xf32>
    %cst_62 = arith.constant 0.000000e+00 : f32
    %265 = vector.broadcast %cst_62 : f32 to vector<2x32xf32>
    %266 = vector.extract_strided_slice %264 {offsets = [0, 0], sizes = [2, 96], strides = [1, 1]} : vector<16x96xf32> to vector<2x96xf32>
    %cst_63 = arith.constant dense<0.000000e+00> : vector<2x96xf32>
    %267 = tpu.matmul %265, %259, %cst_63 {dimension_numbers = #tpu.dot_dimension_numbers<[1], [0], [0], [1], [0, 0, 1, 1], [], []>} : vector<2x32xf32>, vector<32x96xf32>, vector<2x96xf32> -> vector<2x96xf32>
    %268 = vector.extract_strided_slice %266 {offsets = [0, 0], sizes = [2, 32], strides = [1, 1]} : vector<2x96xf32> to vector<2x32xf32>
    %269 = vector.extract_strided_slice %267 {offsets = [0, 0], sizes = [2, 32], strides = [1, 1]} : vector<2x96xf32> to vector<2x32xf32>
    %270 = arith.addf %268, %269 : vector<2x32xf32>
    %271 = arith.negf %270 : vector<2x32xf32>
    %272 = math.exp %271 : vector<2x32xf32>
    %cst_64 = arith.constant 1.000000e+00 : f32
    %273 = vector.broadcast %cst_64 : f32 to vector<2x32xf32>
    %274 = arith.addf %273, %272 : vector<2x32xf32>
    %275 = arith.divf %273, %274 : vector<2x32xf32>
    %276 = vector.extract_strided_slice %266 {offsets = [0, 32], sizes = [2, 32], strides = [1, 1]} : vector<2x96xf32> to vector<2x32xf32>
    %277 = vector.extract_strided_slice %267 {offsets = [0, 32], sizes = [2, 32], strides = [1, 1]} : vector<2x96xf32> to vector<2x32xf32>
    %278 = arith.addf %276, %277 : vector<2x32xf32>
    %279 = arith.negf %278 : vector<2x32xf32>
    %280 = math.exp %279 : vector<2x32xf32>
    %cst_65 = arith.constant 1.000000e+00 : f32
    %281 = vector.broadcast %cst_65 : f32 to vector<2x32xf32>
    %282 = arith.addf %281, %280 : vector<2x32xf32>
    %283 = arith.divf %281, %282 : vector<2x32xf32>
    %284 = vector.extract_strided_slice %266 {offsets = [0, 64], sizes = [2, 32], strides = [1, 1]} : vector<2x96xf32> to vector<2x32xf32>
    %285 = vector.extract_strided_slice %267 {offsets = [0, 64], sizes = [2, 32], strides = [1, 1]} : vector<2x96xf32> to vector<2x32xf32>
    %286 = vector.broadcast %261 : vector<1x32xf32> to vector<2x32xf32>
    %287 = arith.addf %285, %286 : vector<2x32xf32>
    %288 = arith.mulf %275, %287 : vector<2x32xf32>
    %289 = arith.addf %284, %288 : vector<2x32xf32>
    %290 = math.tanh %289 : vector<2x32xf32>
    %cst_66 = arith.constant 1.000000e+00 : f32
    %291 = vector.broadcast %cst_66 : f32 to vector<2x32xf32>
    %292 = arith.subf %291, %283 : vector<2x32xf32>
    %293 = arith.mulf %292, %290 : vector<2x32xf32>
    %294 = arith.mulf %283, %265 : vector<2x32xf32>
    %295 = arith.addf %293, %294 : vector<2x32xf32>
    %296 = vector.extract_strided_slice %264 {offsets = [2, 0], sizes = [2, 96], strides = [1, 1]} : vector<16x96xf32> to vector<2x96xf32>
    %cst_67 = arith.constant dense<0.000000e+00> : vector<2x96xf32>
    %297 = tpu.matmul %295, %259, %cst_67 {dimension_numbers = #tpu.dot_dimension_numbers<[1], [0], [0], [1], [0, 0, 1, 1], [], []>} : vector<2x32xf32>, vector<32x96xf32>, vector<2x96xf32> -> vector<2x96xf32>
    %298 = vector.extract_strided_slice %296 {offsets = [0, 0], sizes = [2, 32], strides = [1, 1]} : vector<2x96xf32> to vector<2x32xf32>
    %299 = vector.extract_strided_slice %297 {offsets = [0, 0], sizes = [2, 32], strides = [1, 1]} : vector<2x96xf32> to vector<2x32xf32>
    %300 = arith.addf %298, %299 : vector<2x32xf32>
    %301 = arith.negf %300 : vector<2x32xf32>
    %302 = math.exp %301 : vector<2x32xf32>
    %cst_68 = arith.constant 1.000000e+00 : f32
    %303 = vector.broadcast %cst_68 : f32 to vector<2x32xf32>
    %304 = arith.addf %303, %302 : vector<2x32xf32>
    %305 = arith.divf %303, %304 : vector<2x32xf32>
    %306 = vector.extract_strided_slice %296 {offsets = [0, 32], sizes = [2, 32], strides = [1, 1]} : vector<2x96xf32> to vector<2x32xf32>
    %307 = vector.extract_strided_slice %297 {offsets = [0, 32], sizes = [2, 32], strides = [1, 1]} : vector<2x96xf32> to vector<2x32xf32>
    %308 = arith.addf %306, %307 : vector<2x32xf32>
    %309 = arith.negf %308 : vector<2x32xf32>
    %310 = math.exp %309 : vector<2x32xf32>
    %cst_69 = arith.constant 1.000000e+00 : f32
    %311 = vector.broadcast %cst_69 : f32 to vector<2x32xf32>
    %312 = arith.addf %311, %310 : vector<2x32xf32>
    %313 = arith.divf %311, %312 : vector<2x32xf32>
    %314 = vector.extract_strided_slice %296 {offsets = [0, 64], sizes = [2, 32], strides = [1, 1]} : vector<2x96xf32> to vector<2x32xf32>
    %315 = vector.extract_strided_slice %297 {offsets = [0, 64], sizes = [2, 32], strides = [1, 1]} : vector<2x96xf32> to vector<2x32xf32>
    %316 = vector.broadcast %261 : vector<1x32xf32> to vector<2x32xf32>
    %317 = arith.addf %315, %316 : vector<2x32xf32>
    %318 = arith.mulf %305, %317 : vector<2x32xf32>
    %319 = arith.addf %314, %318 : vector<2x32xf32>
    %320 = math.tanh %319 : vector<2x32xf32>
    %cst_70 = arith.constant 1.000000e+00 : f32
    %321 = vector.broadcast %cst_70 : f32 to vector<2x32xf32>
    %322 = arith.subf %321, %313 : vector<2x32xf32>
    %323 = arith.mulf %322, %320 : vector<2x32xf32>
    %324 = arith.mulf %313, %295 : vector<2x32xf32>
    %325 = arith.addf %323, %324 : vector<2x32xf32>
    %326 = vector.extract_strided_slice %264 {offsets = [4, 0], sizes = [2, 96], strides = [1, 1]} : vector<16x96xf32> to vector<2x96xf32>
    %cst_71 = arith.constant dense<0.000000e+00> : vector<2x96xf32>
    %327 = tpu.matmul %325, %259, %cst_71 {dimension_numbers = #tpu.dot_dimension_numbers<[1], [0], [0], [1], [0, 0, 1, 1], [], []>} : vector<2x32xf32>, vector<32x96xf32>, vector<2x96xf32> -> vector<2x96xf32>
    %328 = vector.extract_strided_slice %326 {offsets = [0, 0], sizes = [2, 32], strides = [1, 1]} : vector<2x96xf32> to vector<2x32xf32>
    %329 = vector.extract_strided_slice %327 {offsets = [0, 0], sizes = [2, 32], strides = [1, 1]} : vector<2x96xf32> to vector<2x32xf32>
    %330 = arith.addf %328, %329 : vector<2x32xf32>
    %331 = arith.negf %330 : vector<2x32xf32>
    %332 = math.exp %331 : vector<2x32xf32>
    %cst_72 = arith.constant 1.000000e+00 : f32
    %333 = vector.broadcast %cst_72 : f32 to vector<2x32xf32>
    %334 = arith.addf %333, %332 : vector<2x32xf32>
    %335 = arith.divf %333, %334 : vector<2x32xf32>
    %336 = vector.extract_strided_slice %326 {offsets = [0, 32], sizes = [2, 32], strides = [1, 1]} : vector<2x96xf32> to vector<2x32xf32>
    %337 = vector.extract_strided_slice %327 {offsets = [0, 32], sizes = [2, 32], strides = [1, 1]} : vector<2x96xf32> to vector<2x32xf32>
    %338 = arith.addf %336, %337 : vector<2x32xf32>
    %339 = arith.negf %338 : vector<2x32xf32>
    %340 = math.exp %339 : vector<2x32xf32>
    %cst_73 = arith.constant 1.000000e+00 : f32
    %341 = vector.broadcast %cst_73 : f32 to vector<2x32xf32>
    %342 = arith.addf %341, %340 : vector<2x32xf32>
    %343 = arith.divf %341, %342 : vector<2x32xf32>
    %344 = vector.extract_strided_slice %326 {offsets = [0, 64], sizes = [2, 32], strides = [1, 1]} : vector<2x96xf32> to vector<2x32xf32>
    %345 = vector.extract_strided_slice %327 {offsets = [0, 64], sizes = [2, 32], strides = [1, 1]} : vector<2x96xf32> to vector<2x32xf32>
    %346 = vector.broadcast %261 : vector<1x32xf32> to vector<2x32xf32>
    %347 = arith.addf %345, %346 : vector<2x32xf32>
    %348 = arith.mulf %335, %347 : vector<2x32xf32>
    %349 = arith.addf %344, %348 : vector<2x32xf32>
    %350 = math.tanh %349 : vector<2x32xf32>
    %cst_74 = arith.constant 1.000000e+00 : f32
    %351 = vector.broadcast %cst_74 : f32 to vector<2x32xf32>
    %352 = arith.subf %351, %343 : vector<2x32xf32>
    %353 = arith.mulf %352, %350 : vector<2x32xf32>
    %354 = arith.mulf %343, %325 : vector<2x32xf32>
    %355 = arith.addf %353, %354 : vector<2x32xf32>
    %356 = vector.extract_strided_slice %264 {offsets = [6, 0], sizes = [2, 96], strides = [1, 1]} : vector<16x96xf32> to vector<2x96xf32>
    %cst_75 = arith.constant dense<0.000000e+00> : vector<2x96xf32>
    %357 = tpu.matmul %355, %259, %cst_75 {dimension_numbers = #tpu.dot_dimension_numbers<[1], [0], [0], [1], [0, 0, 1, 1], [], []>} : vector<2x32xf32>, vector<32x96xf32>, vector<2x96xf32> -> vector<2x96xf32>
    %358 = vector.extract_strided_slice %356 {offsets = [0, 0], sizes = [2, 32], strides = [1, 1]} : vector<2x96xf32> to vector<2x32xf32>
    %359 = vector.extract_strided_slice %357 {offsets = [0, 0], sizes = [2, 32], strides = [1, 1]} : vector<2x96xf32> to vector<2x32xf32>
    %360 = arith.addf %358, %359 : vector<2x32xf32>
    %361 = arith.negf %360 : vector<2x32xf32>
    %362 = math.exp %361 : vector<2x32xf32>
    %cst_76 = arith.constant 1.000000e+00 : f32
    %363 = vector.broadcast %cst_76 : f32 to vector<2x32xf32>
    %364 = arith.addf %363, %362 : vector<2x32xf32>
    %365 = arith.divf %363, %364 : vector<2x32xf32>
    %366 = vector.extract_strided_slice %356 {offsets = [0, 32], sizes = [2, 32], strides = [1, 1]} : vector<2x96xf32> to vector<2x32xf32>
    %367 = vector.extract_strided_slice %357 {offsets = [0, 32], sizes = [2, 32], strides = [1, 1]} : vector<2x96xf32> to vector<2x32xf32>
    %368 = arith.addf %366, %367 : vector<2x32xf32>
    %369 = arith.negf %368 : vector<2x32xf32>
    %370 = math.exp %369 : vector<2x32xf32>
    %cst_77 = arith.constant 1.000000e+00 : f32
    %371 = vector.broadcast %cst_77 : f32 to vector<2x32xf32>
    %372 = arith.addf %371, %370 : vector<2x32xf32>
    %373 = arith.divf %371, %372 : vector<2x32xf32>
    %374 = vector.extract_strided_slice %356 {offsets = [0, 64], sizes = [2, 32], strides = [1, 1]} : vector<2x96xf32> to vector<2x32xf32>
    %375 = vector.extract_strided_slice %357 {offsets = [0, 64], sizes = [2, 32], strides = [1, 1]} : vector<2x96xf32> to vector<2x32xf32>
    %376 = vector.broadcast %261 : vector<1x32xf32> to vector<2x32xf32>
    %377 = arith.addf %375, %376 : vector<2x32xf32>
    %378 = arith.mulf %365, %377 : vector<2x32xf32>
    %379 = arith.addf %374, %378 : vector<2x32xf32>
    %380 = math.tanh %379 : vector<2x32xf32>
    %cst_78 = arith.constant 1.000000e+00 : f32
    %381 = vector.broadcast %cst_78 : f32 to vector<2x32xf32>
    %382 = arith.subf %381, %373 : vector<2x32xf32>
    %383 = arith.mulf %382, %380 : vector<2x32xf32>
    %384 = arith.mulf %373, %355 : vector<2x32xf32>
    %385 = arith.addf %383, %384 : vector<2x32xf32>
    %386 = vector.extract_strided_slice %264 {offsets = [8, 0], sizes = [2, 96], strides = [1, 1]} : vector<16x96xf32> to vector<2x96xf32>
    %cst_79 = arith.constant dense<0.000000e+00> : vector<2x96xf32>
    %387 = tpu.matmul %385, %259, %cst_79 {dimension_numbers = #tpu.dot_dimension_numbers<[1], [0], [0], [1], [0, 0, 1, 1], [], []>} : vector<2x32xf32>, vector<32x96xf32>, vector<2x96xf32> -> vector<2x96xf32>
    %388 = vector.extract_strided_slice %386 {offsets = [0, 0], sizes = [2, 32], strides = [1, 1]} : vector<2x96xf32> to vector<2x32xf32>
    %389 = vector.extract_strided_slice %387 {offsets = [0, 0], sizes = [2, 32], strides = [1, 1]} : vector<2x96xf32> to vector<2x32xf32>
    %390 = arith.addf %388, %389 : vector<2x32xf32>
    %391 = arith.negf %390 : vector<2x32xf32>
    %392 = math.exp %391 : vector<2x32xf32>
    %cst_80 = arith.constant 1.000000e+00 : f32
    %393 = vector.broadcast %cst_80 : f32 to vector<2x32xf32>
    %394 = arith.addf %393, %392 : vector<2x32xf32>
    %395 = arith.divf %393, %394 : vector<2x32xf32>
    %396 = vector.extract_strided_slice %386 {offsets = [0, 32], sizes = [2, 32], strides = [1, 1]} : vector<2x96xf32> to vector<2x32xf32>
    %397 = vector.extract_strided_slice %387 {offsets = [0, 32], sizes = [2, 32], strides = [1, 1]} : vector<2x96xf32> to vector<2x32xf32>
    %398 = arith.addf %396, %397 : vector<2x32xf32>
    %399 = arith.negf %398 : vector<2x32xf32>
    %400 = math.exp %399 : vector<2x32xf32>
    %cst_81 = arith.constant 1.000000e+00 : f32
    %401 = vector.broadcast %cst_81 : f32 to vector<2x32xf32>
    %402 = arith.addf %401, %400 : vector<2x32xf32>
    %403 = arith.divf %401, %402 : vector<2x32xf32>
    %404 = vector.extract_strided_slice %386 {offsets = [0, 64], sizes = [2, 32], strides = [1, 1]} : vector<2x96xf32> to vector<2x32xf32>
    %405 = vector.extract_strided_slice %387 {offsets = [0, 64], sizes = [2, 32], strides = [1, 1]} : vector<2x96xf32> to vector<2x32xf32>
    %406 = vector.broadcast %261 : vector<1x32xf32> to vector<2x32xf32>
    %407 = arith.addf %405, %406 : vector<2x32xf32>
    %408 = arith.mulf %395, %407 : vector<2x32xf32>
    %409 = arith.addf %404, %408 : vector<2x32xf32>
    %410 = math.tanh %409 : vector<2x32xf32>
    %cst_82 = arith.constant 1.000000e+00 : f32
    %411 = vector.broadcast %cst_82 : f32 to vector<2x32xf32>
    %412 = arith.subf %411, %403 : vector<2x32xf32>
    %413 = arith.mulf %412, %410 : vector<2x32xf32>
    %414 = arith.mulf %403, %385 : vector<2x32xf32>
    %415 = arith.addf %413, %414 : vector<2x32xf32>
    %416 = vector.extract_strided_slice %264 {offsets = [10, 0], sizes = [2, 96], strides = [1, 1]} : vector<16x96xf32> to vector<2x96xf32>
    %cst_83 = arith.constant dense<0.000000e+00> : vector<2x96xf32>
    %417 = tpu.matmul %415, %259, %cst_83 {dimension_numbers = #tpu.dot_dimension_numbers<[1], [0], [0], [1], [0, 0, 1, 1], [], []>} : vector<2x32xf32>, vector<32x96xf32>, vector<2x96xf32> -> vector<2x96xf32>
    %418 = vector.extract_strided_slice %416 {offsets = [0, 0], sizes = [2, 32], strides = [1, 1]} : vector<2x96xf32> to vector<2x32xf32>
    %419 = vector.extract_strided_slice %417 {offsets = [0, 0], sizes = [2, 32], strides = [1, 1]} : vector<2x96xf32> to vector<2x32xf32>
    %420 = arith.addf %418, %419 : vector<2x32xf32>
    %421 = arith.negf %420 : vector<2x32xf32>
    %422 = math.exp %421 : vector<2x32xf32>
    %cst_84 = arith.constant 1.000000e+00 : f32
    %423 = vector.broadcast %cst_84 : f32 to vector<2x32xf32>
    %424 = arith.addf %423, %422 : vector<2x32xf32>
    %425 = arith.divf %423, %424 : vector<2x32xf32>
    %426 = vector.extract_strided_slice %416 {offsets = [0, 32], sizes = [2, 32], strides = [1, 1]} : vector<2x96xf32> to vector<2x32xf32>
    %427 = vector.extract_strided_slice %417 {offsets = [0, 32], sizes = [2, 32], strides = [1, 1]} : vector<2x96xf32> to vector<2x32xf32>
    %428 = arith.addf %426, %427 : vector<2x32xf32>
    %429 = arith.negf %428 : vector<2x32xf32>
    %430 = math.exp %429 : vector<2x32xf32>
    %cst_85 = arith.constant 1.000000e+00 : f32
    %431 = vector.broadcast %cst_85 : f32 to vector<2x32xf32>
    %432 = arith.addf %431, %430 : vector<2x32xf32>
    %433 = arith.divf %431, %432 : vector<2x32xf32>
    %434 = vector.extract_strided_slice %416 {offsets = [0, 64], sizes = [2, 32], strides = [1, 1]} : vector<2x96xf32> to vector<2x32xf32>
    %435 = vector.extract_strided_slice %417 {offsets = [0, 64], sizes = [2, 32], strides = [1, 1]} : vector<2x96xf32> to vector<2x32xf32>
    %436 = vector.broadcast %261 : vector<1x32xf32> to vector<2x32xf32>
    %437 = arith.addf %435, %436 : vector<2x32xf32>
    %438 = arith.mulf %425, %437 : vector<2x32xf32>
    %439 = arith.addf %434, %438 : vector<2x32xf32>
    %440 = math.tanh %439 : vector<2x32xf32>
    %cst_86 = arith.constant 1.000000e+00 : f32
    %441 = vector.broadcast %cst_86 : f32 to vector<2x32xf32>
    %442 = arith.subf %441, %433 : vector<2x32xf32>
    %443 = arith.mulf %442, %440 : vector<2x32xf32>
    %444 = arith.mulf %433, %415 : vector<2x32xf32>
    %445 = arith.addf %443, %444 : vector<2x32xf32>
    %446 = vector.extract_strided_slice %264 {offsets = [12, 0], sizes = [2, 96], strides = [1, 1]} : vector<16x96xf32> to vector<2x96xf32>
    %cst_87 = arith.constant dense<0.000000e+00> : vector<2x96xf32>
    %447 = tpu.matmul %445, %259, %cst_87 {dimension_numbers = #tpu.dot_dimension_numbers<[1], [0], [0], [1], [0, 0, 1, 1], [], []>} : vector<2x32xf32>, vector<32x96xf32>, vector<2x96xf32> -> vector<2x96xf32>
    %448 = vector.extract_strided_slice %446 {offsets = [0, 0], sizes = [2, 32], strides = [1, 1]} : vector<2x96xf32> to vector<2x32xf32>
    %449 = vector.extract_strided_slice %447 {offsets = [0, 0], sizes = [2, 32], strides = [1, 1]} : vector<2x96xf32> to vector<2x32xf32>
    %450 = arith.addf %448, %449 : vector<2x32xf32>
    %451 = arith.negf %450 : vector<2x32xf32>
    %452 = math.exp %451 : vector<2x32xf32>
    %cst_88 = arith.constant 1.000000e+00 : f32
    %453 = vector.broadcast %cst_88 : f32 to vector<2x32xf32>
    %454 = arith.addf %453, %452 : vector<2x32xf32>
    %455 = arith.divf %453, %454 : vector<2x32xf32>
    %456 = vector.extract_strided_slice %446 {offsets = [0, 32], sizes = [2, 32], strides = [1, 1]} : vector<2x96xf32> to vector<2x32xf32>
    %457 = vector.extract_strided_slice %447 {offsets = [0, 32], sizes = [2, 32], strides = [1, 1]} : vector<2x96xf32> to vector<2x32xf32>
    %458 = arith.addf %456, %457 : vector<2x32xf32>
    %459 = arith.negf %458 : vector<2x32xf32>
    %460 = math.exp %459 : vector<2x32xf32>
    %cst_89 = arith.constant 1.000000e+00 : f32
    %461 = vector.broadcast %cst_89 : f32 to vector<2x32xf32>
    %462 = arith.addf %461, %460 : vector<2x32xf32>
    %463 = arith.divf %461, %462 : vector<2x32xf32>
    %464 = vector.extract_strided_slice %446 {offsets = [0, 64], sizes = [2, 32], strides = [1, 1]} : vector<2x96xf32> to vector<2x32xf32>
    %465 = vector.extract_strided_slice %447 {offsets = [0, 64], sizes = [2, 32], strides = [1, 1]} : vector<2x96xf32> to vector<2x32xf32>
    %466 = vector.broadcast %261 : vector<1x32xf32> to vector<2x32xf32>
    %467 = arith.addf %465, %466 : vector<2x32xf32>
    %468 = arith.mulf %455, %467 : vector<2x32xf32>
    %469 = arith.addf %464, %468 : vector<2x32xf32>
    %470 = math.tanh %469 : vector<2x32xf32>
    %cst_90 = arith.constant 1.000000e+00 : f32
    %471 = vector.broadcast %cst_90 : f32 to vector<2x32xf32>
    %472 = arith.subf %471, %463 : vector<2x32xf32>
    %473 = arith.mulf %472, %470 : vector<2x32xf32>
    %474 = arith.mulf %463, %445 : vector<2x32xf32>
    %475 = arith.addf %473, %474 : vector<2x32xf32>
    %476 = vector.extract_strided_slice %264 {offsets = [14, 0], sizes = [2, 96], strides = [1, 1]} : vector<16x96xf32> to vector<2x96xf32>
    %cst_91 = arith.constant dense<0.000000e+00> : vector<2x96xf32>
    %477 = tpu.matmul %475, %259, %cst_91 {dimension_numbers = #tpu.dot_dimension_numbers<[1], [0], [0], [1], [0, 0, 1, 1], [], []>} : vector<2x32xf32>, vector<32x96xf32>, vector<2x96xf32> -> vector<2x96xf32>
    %478 = vector.extract_strided_slice %476 {offsets = [0, 0], sizes = [2, 32], strides = [1, 1]} : vector<2x96xf32> to vector<2x32xf32>
    %479 = vector.extract_strided_slice %477 {offsets = [0, 0], sizes = [2, 32], strides = [1, 1]} : vector<2x96xf32> to vector<2x32xf32>
    %480 = arith.addf %478, %479 : vector<2x32xf32>
    %481 = arith.negf %480 : vector<2x32xf32>
    %482 = math.exp %481 : vector<2x32xf32>
    %cst_92 = arith.constant 1.000000e+00 : f32
    %483 = vector.broadcast %cst_92 : f32 to vector<2x32xf32>
    %484 = arith.addf %483, %482 : vector<2x32xf32>
    %485 = arith.divf %483, %484 : vector<2x32xf32>
    %486 = vector.extract_strided_slice %476 {offsets = [0, 32], sizes = [2, 32], strides = [1, 1]} : vector<2x96xf32> to vector<2x32xf32>
    %487 = vector.extract_strided_slice %477 {offsets = [0, 32], sizes = [2, 32], strides = [1, 1]} : vector<2x96xf32> to vector<2x32xf32>
    %488 = arith.addf %486, %487 : vector<2x32xf32>
    %489 = arith.negf %488 : vector<2x32xf32>
    %490 = math.exp %489 : vector<2x32xf32>
    %cst_93 = arith.constant 1.000000e+00 : f32
    %491 = vector.broadcast %cst_93 : f32 to vector<2x32xf32>
    %492 = arith.addf %491, %490 : vector<2x32xf32>
    %493 = arith.divf %491, %492 : vector<2x32xf32>
    %494 = vector.extract_strided_slice %476 {offsets = [0, 64], sizes = [2, 32], strides = [1, 1]} : vector<2x96xf32> to vector<2x32xf32>
    %495 = vector.extract_strided_slice %477 {offsets = [0, 64], sizes = [2, 32], strides = [1, 1]} : vector<2x96xf32> to vector<2x32xf32>
    %496 = vector.broadcast %261 : vector<1x32xf32> to vector<2x32xf32>
    %497 = arith.addf %495, %496 : vector<2x32xf32>
    %498 = arith.mulf %485, %497 : vector<2x32xf32>
    %499 = arith.addf %494, %498 : vector<2x32xf32>
    %500 = math.tanh %499 : vector<2x32xf32>
    %cst_94 = arith.constant 1.000000e+00 : f32
    %501 = vector.broadcast %cst_94 : f32 to vector<2x32xf32>
    %502 = arith.subf %501, %493 : vector<2x32xf32>
    %503 = arith.mulf %502, %500 : vector<2x32xf32>
    %504 = arith.mulf %493, %475 : vector<2x32xf32>
    %505 = arith.addf %503, %504 : vector<2x32xf32>
    %c0_95 = arith.constant 0 : index
    %c0_96 = arith.constant 0 : index
    %506 = vector.load %arg9[%c0_95, %c0_96] : memref<32x4xf32, #tpu.memory_space<vmem>>, vector<32x4xf32>
    %cst_97 = arith.constant dense<0.000000e+00> : vector<2x4xf32>
    %507 = tpu.matmul %505, %506, %cst_97 {dimension_numbers = #tpu.dot_dimension_numbers<[1], [0], [0], [1], [0, 0, 1, 1], [], []>} : vector<2x32xf32>, vector<32x4xf32>, vector<2x4xf32> -> vector<2x4xf32>
    %c0_98 = arith.constant 0 : index
    %c0_99 = arith.constant 0 : index
    %508 = vector.load %arg10[%c0_98, %c0_99] : memref<1x4xf32, #tpu.memory_space<vmem>>, vector<1x4xf32>
    %509 = vector.broadcast %508 : vector<1x4xf32> to vector<2x4xf32>
    %510 = arith.addf %507, %509 : vector<2x4xf32>
    %c0_100 = arith.constant 0 : index
    %c0_101 = arith.constant 0 : index
    %511 = vector.load %arg11[%c0_100, %c0_101] : memref<2x4xf32, #tpu.memory_space<vmem>>, vector<2x4xf32>
    tpu.vector_store %arg11[%c0_100, %c0_101], %510 {strides = array<i32>} : memref<2x4xf32, #tpu.memory_space<vmem>>, vector<2x4xf32>,
    return
  }
}

</mosaic_0001>

<llo_original>
// kernel: gru_predictor_forward.1
$region0: #{gru_predictor_forward.1}
  #allocation0 [shape = 'u32[]', space=smem, size = 0x4, offset = 0x4, fixed_abs, tag = 'smem constant byte address 0x4 - core index']
  #allocation1 [shape = 'u32[144,128]{1,0:T(1,128)}', space=vmem, size = 0x12000, scoped, tag = 'internal scratch']
  #allocation2 [shape = 'f32[16,32]{1,0:T(8,128)}', space=vmem, size = 0x2000, scoped, tag = 'scratch operand']
  %s0 = inlined_call_operand.vmem [shape: f32[16,8], index: 0, kind: input, shape index: {}]
  %s1 = inlined_call_operand.vmem [shape: f32[8,96], index: 1, kind: input, shape index: {}]
  %s2 = inlined_call_operand.vmem [shape: f32[32,96], index: 2, kind: input, shape index: {}]
  %s3 = inlined_call_operand.vmem [shape: f32[1,96], index: 3, kind: input, shape index: {}]
  %s4 = inlined_call_operand.vmem [shape: f32[1,32], index: 4, kind: input, shape index: {}]
  %s5 = inlined_call_operand.vmem [shape: f32[32,96], index: 5, kind: input, shape index: {}]
  %s6 = inlined_call_operand.hbm [shape: f32[32,96], index: 6, kind: input, shape index: {}]
  %s7 = inlined_call_operand.vmem [shape: f32[1,96], index: 7, kind: input, shape index: {}]
  %s8 = inlined_call_operand.vmem [shape: f32[1,32], index: 8, kind: input, shape index: {}]
  %s9 = inlined_call_operand.vmem [shape: f32[32,4], index: 9, kind: input, shape index: {}]
  %s10 = inlined_call_operand.vmem [shape: f32[1,4], index: 10, kind: input, shape index: {}]
  %s11 = inlined_call_operand.hbm [shape: f32[2,4], index: 11, kind: output, shape index: {}]
  %s12 = sld [smem:[#allocation0]]
  $region58: #{gru_predictor_forward.1} parent=0
    _
  %s14 = ssub.s32 1, %s12
  %s15 = scalar_select 0, %s14, %s12
  $region1: #{gru_predictor_forward.1} parent=0
    #allocation3 [shape = 'u8[16384]{0}', space=vmem, size = 0x4000, scoped, tag = 'input window, operand 6, single buffered']
    #allocation4 [shape = 's32[1]{0}', space=sflag, size = 0x4, scoped, tag = 'scoped memory for gru_predictor_forward.1']
    #allocation5 [shape = 's32[1]{0}', space=sflag, size = 0x4, scoped, tag = 'scoped memory for gru_predictor_forward.1']
    #allocation6 [shape = 'u8[1024]{0}', space=vmem, size = 0x400, scoped, tag = 'output window, operand 0, single buffered']
    %16 = vsyncpa [#allocation4], 0
    %17 = vsyncpa [#allocation5], 0
    // Predicated region
    $region2: #{gru_predictor_forward.1} parent=1 // pred_check
      _
    $region3: #{gru_predictor_forward.1} parent=1 // pred_check_branch
      %19 = sbr.rel (0) target = $region5
    $region4: #{gru_predictor_forward.1} parent=1 // pred_region
      _
    $region5: #{gru_predictor_forward.1} parent=1 // pred_fallthru
      _
    // Predicated region
    $region6: #{gru_predictor_forward.1} parent=1 // pred_check
      _
    $region7: #{gru_predictor_forward.1} parent=1 // pred_check_branch
      %21 = sbr.rel (0) target = $region9
    $region8: #{gru_predictor_forward.1} parent=1 // pred_region
      _
    $region9: #{gru_predictor_forward.1} parent=1 // pred_fallthru
      _
    // Predicated region
    $region10: #{gru_predictor_forward.1} parent=1 // pred_check
      _
    $region11: #{gru_predictor_forward.1} parent=1 // pred_check_branch
      %23 = sbr.rel (0) target = $region13
    $region12: #{gru_predictor_forward.1} parent=1 // pred_region
      _
    $region13: #{gru_predictor_forward.1} parent=1 // pred_fallthru
      _
    // Predicated region
    $region14: #{gru_predictor_forward.1} parent=1 // pred_check
      _
    $region15: #{gru_predictor_forward.1} parent=1 // pred_check_branch
      %25 = sbr.rel (0) target = $region17
    $region16: #{gru_predictor_forward.1} parent=1 // pred_region
      _
    $region17: #{gru_predictor_forward.1} parent=1 // pred_fallthru
      _
    // Predicated region
    $region18: #{gru_predictor_forward.1} parent=1 // pred_check
      _
    $region19: #{gru_predictor_forward.1} parent=1 // pred_check_branch
      %27 = sbr.rel (0) target = $region21
    $region20: #{gru_predictor_forward.1} parent=1 // pred_region
      _
    $region21: #{gru_predictor_forward.1} parent=1 // pred_fallthru
      _
    // Predicated region
    $region22: #{gru_predictor_forward.1} parent=1 // pred_check
      _
    $region23: #{gru_predictor_forward.1} parent=1 // pred_check_branch
      %29 = sbr.rel (0) target = $region25
    $region24: #{gru_predictor_forward.1} parent=1 // pred_region
      _
    $region25: #{gru_predictor_forward.1} parent=1 // pred_fallthru
      _
    // Predicated region
    $region26: #{gru_predictor_forward.1} parent=1 // pred_check
      _
    $region27: #{gru_predictor_forward.1} parent=1 // pred_check_branch
      %31 = sbr.rel (0) target = $region29
    $region28: #{gru_predictor_forward.1} parent=1 // pred_region
      %s33 = ssub.s32 512, 512
      %34 = vsyncadd [#allocation4], %s33
      %s35 = sshll.u32 [#allocation3], 4
      %s36 = int_to_ptr.vmem [resolvable:$true] %s35
      %41 = dma.hbm_to_vmem [thread:$0]  %s6, 512, %s36, [#allocation4], 128, 128, 8
    $region29: #{gru_predictor_forward.1} parent=1 // pred_fallthru
      _
    // Predicated region
    $region30: #{gru_predictor_forward.1} parent=1 // pred_check
      _
    $region31: #{gru_predictor_forward.1} parent=1 // pred_check_branch
      %43 = sbr.rel (0) target = $region33
    $region32: #{gru_predictor_forward.1} parent=1 // pred_region
      _
    $region33: #{gru_predictor_forward.1} parent=1 // pred_fallthru
      _
    // Predicated region
    $region34: #{gru_predictor_forward.1} parent=1 // pred_check
      _
    $region35: #{gru_predictor_forward.1} parent=1 // pred_check_branch
      %45 = sbr.rel (0) target = $region37
    $region36: #{gru_predictor_forward.1} parent=1 // pred_region
      _
    $region37: #{gru_predictor_forward.1} parent=1 // pred_fallthru
      _
    // Predicated region
    $region38: #{gru_predictor_forward.1} parent=1 // pred_check
      _
    $region39: #{gru_predictor_forward.1} parent=1 // pred_check_branch
      %47 = sbr.rel (0) target = $region41
    $region40: #{gru_predictor_forward.1} parent=1 // pred_region
      _
    $region41: #{gru_predictor_forward.1} parent=1 // pred_fallthru
      _
    // Predicated region
    $region42: #{gru_predictor_forward.1} parent=1 // pred_check
      _
    $region43: #{gru_predictor_forward.1} parent=1 // pred_check_branch
      %49 = sbr.rel (0) target = $region45
    $region44: #{gru_predictor_forward.1} parent=1 // pred_region
      _
    $region45: #{gru_predictor_forward.1} parent=1 // pred_fallthru
      _
    // Predicated region
    $region46: #{gru_predictor_forward.1} parent=1 // pred_check
      _
    $region47: #{gru_predictor_forward.1} parent=1 // pred_check_branch
      %51 = sbr.rel (0) target = $region49
    $region48: #{gru_predictor_forward.1} parent=1 // pred_region
      %52 = dma.done [#allocation4], 512
    $region49: #{gru_predictor_forward.1} parent=1 // pred_fallthru
      _
    %v53 = vld [vmem:[%s0] sm:$0xff]
    %v54 = vld [vmem:[%s0 + $0x8] sm:$0xff]
    %v55 = vld [vmem:[%s1] sm:$0xff]
    %v56 = vld [vmem:[%s2] sm:$0xff]
    %v57 = vld [vmem:[%s2 + $0x8] sm:$0xff]
    %v58 = vld [vmem:[%s2 + $0x10] sm:$0xff]
    %v59 = vld [vmem:[%s2 + $0x18] sm:$0xff]
    %v60 = vld [vmem:[%s3] sm:$0x1]
    %v61 = vld [vmem:[%s4] sm:$0x1]
    %v63 = vlaneseq
    %v64 = vshrl.u32 %v63, 7
    %v65 = vsub.s32 0, %v64
    %v66 = vrot.slane %v60, %v65
    %vm68 = vcmask 64512
    %v70 = vsel %vm68, %v53, 0
    %v73 = vsel %vm68, %v54, 0
    %75 = vmatprep.subr.mxu0 0.0
    %76 = vmatpush1.msra.mxu0 0.0
    %77 = vmatprep.subr.mxu0 0.0
    %78 = vmatpush1.msra.mxu0 0.0
    %79 = vmatprep.subr.mxu0 0.0
    %80 = vmatpush1.msra.mxu0 0.0
    %81 = vmatprep.subr.mxu0 0.0
    %82 = vmatpush1.msra.mxu0 0.0
    %83 = vmatprep.subr.mxu0 0.0
    %84 = vmatpush1.msra.mxu0 0.0
    %85 = vmatprep.subr.mxu0 0.0
    %86 = vmatpush1.msra.mxu0 0.0
    %87 = vmatprep.subr.mxu0 0.0
    %88 = vmatpush1.msra.mxu0 0.0
    %89 = vmatprep.subr.mxu0 0.0
    %90 = vmatpush1.msra.mxu0 0.0
    %91 = vmatprep.subr.mxu0 0.0
    %92 = vmatpush1.msra.mxu0 0.0
    %93 = vmatprep.subr.mxu0 0.0
    %94 = vmatpush1.msra.mxu0 0.0
    %95 = vmatprep.subr.mxu0 0.0
    %96 = vmatpush1.msra.mxu0 0.0
    %97 = vmatprep.subr.mxu0 0.0
    %98 = vmatpush1.msra.mxu0 0.0
    %99 = vmatprep.subr.mxu0 0.0
    %100 = vmatpush1.msra.mxu0 0.0
    %101 = vmatprep.subr.mxu0 0.0
    %102 = vmatpush1.msra.mxu0 0.0
    %103 = vmatprep.subr.mxu0 0.0
    %104 = vmatpush1.msra.mxu0 0.0
    %105 = vmatprep.subr.mxu0 0.0
    %106 = vmatpush1.msra.mxu0 %v55
    %107 = vmatprep.subr.mxu0 0.0
    %108 = vmatpush2.msra.mxu0 0.0
    %109 = vmatprep.subr.mxu0 0.0
    %110 = vmatpush2.msra.mxu0 0.0
    %111 = vmatprep.subr.mxu0 0.0
    %112 = vmatpush2.msra.mxu0 0.0
    %113 = vmatprep.subr.mxu0 0.0
    %114 = vmatpush2.msra.mxu0 0.0
    %115 = vmatprep.subr.mxu0 0.0
    %116 = vmatpush2.msra.mxu0 0.0
    %117 = vmatprep.subr.mxu0 0.0
    %118 = vmatpush2.msra.mxu0 0.0
    %119 = vmatprep.subr.mxu0 0.0
    %120 = vmatpush2.msra.mxu0 0.0
    %121 = vmatprep.subr.mxu0 0.0
    %122 = vmatpush2.msra.mxu0 0.0
    %123 = vmatprep.subr.mxu0 0.0
    %124 = vmatpush2.msra.mxu0 0.0
    %125 = vmatprep.subr.mxu0 0.0
    %126 = vmatpush2.msra.mxu0 0.0
    %127 = vmatprep.subr.mxu0 0.0
    %128 = vmatpush2.msra.mxu0 0.0
    %129 = vmatprep.subr.mxu0 0.0
    %130 = vmatpush2.msra.mxu0 0.0
    %131 = vmatprep.subr.mxu0 0.0
    %132 = vmatpush2.msra.mxu0 0.0
    %133 = vmatprep.subr.mxu0 0.0
    %134 = vmatpush2.msra.mxu0 0.0
    %135 = vmatprep.subr.mxu0 0.0
    %136 = vmatpush2.msra.mxu0 0.0
    %137 = vmatprep.subr.mxu0 0.0
    %138 = vmatpush2.msra.mxu0 0.0
    %139 = vmatprep.mubr.f32.mxu0 0.0
    %140 = vmatmul.mubr.f32.gmra.mxu0 %v70
    %v141 = vpop.f32.mrf.mxu0
    %v142 = vadd.f32 %v66, %v141
    %v143 = vpop.f32.mrf.mxu0
    %144 = vmatprep.mubr.f32.mxu0 0.0
    %145 = vmatmul.mubr.f32.gmra.mxu0 %v73
    %v146 = vpop.f32.mrf.mxu0
    %v147 = vadd.f32 %v66, %v146
    %v148 = vpop.f32.mrf.mxu0
    %149 = vdwg.mxu0
    %vm150 = vcmask 261120
    %v152 = vsel %vm150, 0.0, 0
    %154 = vmatprep.subr.mxu0 0.0
    %155 = vmatpush1.msra.mxu0 0.0
    %156 = vmatprep.subr.mxu0 0.0
    %157 = vmatpush1.msra.mxu0 0.0
    %158 = vmatprep.subr.mxu0 0.0
    %159 = vmatpush1.msra.mxu0 0.0
    %160 = vmatprep.subr.mxu0 0.0
    %161 = vmatpush1.msra.mxu0 0.0
    %162 = vmatprep.subr.mxu0 0.0
    %163 = vmatpush1.msra.mxu0 0.0
    %164 = vmatprep.subr.mxu0 0.0
    %165 = vmatpush1.msra.mxu0 0.0
    %166 = vmatprep.subr.mxu0 0.0
    %167 = vmatpush1.msra.mxu0 0.0
    %168 = vmatprep.subr.mxu0 0.0
    %169 = vmatpush1.msra.mxu0 0.0
    %170 = vmatprep.subr.mxu0 0.0
    %171 = vmatpush1.msra.mxu0 0.0
    %172 = vmatprep.subr.mxu0 0.0
    %173 = vmatpush1.msra.mxu0 0.0
    %174 = vmatprep.subr.mxu0 0.0
    %175 = vmatpush1.msra.mxu0 0.0
    %176 = vmatprep.subr.mxu0 0.0
    %177 = vmatpush1.msra.mxu0 0.0
    %178 = vmatprep.subr.mxu0 0.0
    %179 = vmatpush1.msra.mxu0 %v59
    %180 = vmatprep.subr.mxu0 0.0
    %181 = vmatpush1.msra.mxu0 %v58
    %182 = vmatprep.subr.mxu0 0.0
    %183 = vmatpush1.msra.mxu0 %v57
    %184 = vmatprep.subr.mxu0 0.0
    %185 = vmatpush1.msra.mxu0 %v56
    %186 = vmatprep.subr.mxu0 0.0
    %187 = vmatpush2.msra.mxu0 0.0
    %188 = vmatprep.subr.mxu0 0.0
    %189 = vmatpush2.msra.mxu0 0.0
    %190 = vmatprep.subr.mxu0 0.0
    %191 = vmatpush2.msra.mxu0 0.0
    %192 = vmatprep.subr.mxu0 0.0
    %193 = vmatpush2.msra.mxu0 0.0
    %194 = vmatprep.subr.mxu0 0.0
    %195 = vmatpush2.msra.mxu0 0.0
    %196 = vmatprep.subr.mxu0 0.0
    %197 = vmatpush2.msra.mxu0 0.0
    %198 = vmatprep.subr.mxu0 0.0
    %199 = vmatpush2.msra.mxu0 0.0
    %200 = vmatprep.subr.mxu0 0.0
    %201 = vmatpush2.msra.mxu0 0.0
    %202 = vmatprep.subr.mxu0 0.0
    %203 = vmatpush2.msra.mxu0 0.0
    %204 = vmatprep.subr.mxu0 0.0
    %205 = vmatpush2.msra.mxu0 0.0
    %206 = vmatprep.subr.mxu0 0.0
    %207 = vmatpush2.msra.mxu0 0.0
    %208 = vmatprep.subr.mxu0 0.0
    %209 = vmatpush2.msra.mxu0 0.0
    %210 = vmatprep.subr.mxu0 0.0
    %211 = vmatpush2.msra.mxu0 0.0
    %212 = vmatprep.subr.mxu0 0.0
    %213 = vmatpush2.msra.mxu0 0.0
    %214 = vmatprep.subr.mxu0 0.0
    %215 = vmatpush2.msra.mxu0 0.0
    %216 = vmatprep.subr.mxu0 0.0
    %217 = vmatpush2.msra.mxu0 0.0
    %218 = vmatprep.mubr.f32.mxu0 0.0
    %219 = vmatmul.mubr.f32.gmra.mxu0 %v152
    %v220 = vpop.f32.mrf.mxu0
    %v221 = vadd.f32 0.0, %v220
    %v222 = vpop.f32.mrf.mxu0
    %223 = vdwg.mxu0
    %v224 = vadd.f32 %v142, %v221
    %v225 = vxor.u32 %v224, 2147483648
    %v226 = vmul.f32 %v225, 1.442695
    %v227 = vpow.pop %v226
    %v228 = vadd.f32 %v227, 1.0
    %v229 = vrcp.pop %v228
    %v230 = vmul.f32 1.0, %v229
    %v232 = vlaneseq
    %v233 = vshrl.u32 %v232, 7
    %v234 = vsub.s32 0, %v233
    %v235 = vrot.slane %v61, %v234
    %236 = vrot.lane.b32.xlu0 %v235, 64
    %v237 = vpop.permute.xlu0 %236
    %v239 = vadd.f32 %v221, %v237
    %241 = vrot.lane.b32.xlu0 %v239, 64
    %v242 = vpop.permute.xlu0 %241
    %v244 = vmul.f32 %v230, %v242
    %246 = vrot.lane.b32.xlu0 %v244, 64
    %v247 = vpop.permute.xlu0 %246
    %v249 = vadd.f32 %v142, %v247
    %v250 = vtanh.pop %v249
    %v251 = vsub.f32 1.0, %v230
    %253 = vrot.lane.b32.xlu0 %v250, 96
    %v254 = vpop.permute.xlu0 %253
    %v256 = vmul.f32 %v251, %v254
    %v257 = vmul.f32 %v230, 0.0
    %v258 = vadd.f32 %v256, %v257
    %260 = vrot.lane.b32.xlu0 %v258, 96
    %v261 = vpop.permute.xlu0 %260
    %vm263 = vcmask 254976
    %264 = vst.msk [vmem:[#allocation2] sm:$0x3] %vm263, %v261
    %v265 = vsel %vm150, %v261, 0
    %267 = vmatprep.subr.mxu0 0.0
    %268 = vmatpush1.msra.mxu0 0.0
    %269 = vmatprep.subr.mxu0 0.0
    %270 = vmatpush1.msra.mxu0 0.0
    %271 = vmatprep.subr.mxu0 0.0
    %272 = vmatpush1.msra.mxu0 0.0
    %273 = vmatprep.subr.mxu0 0.0
    %274 = vmatpush1.msra.mxu0 0.0
    %275 = vmatprep.subr.mxu0 0.0
    %276 = vmatpush1.msra.mxu0 0.0
    %277 = vmatprep.subr.mxu0 0.0
    %278 = vmatpush1.msra.mxu0 0.0
    %279 = vmatprep.subr.mxu0 0.0
    %280 = vmatpush1.msra.mxu0 0.0
    %281 = vmatprep.subr.mxu0 0.0
    %282 = vmatpush1.msra.mxu0 0.0
    %283 = vmatprep.subr.mxu0 0.0
    %284 = vmatpush1.msra.mxu0 0.0
    %285 = vmatprep.subr.mxu0 0.0
    %286 = vmatpush1.msra.mxu0 0.0
    %287 = vmatprep.subr.mxu0 0.0
    %288 = vmatpush1.msra.mxu0 0.0
    %289 = vmatprep.subr.mxu0 0.0
    %290 = vmatpush1.msra.mxu0 0.0
    %291 = vmatprep.subr.mxu0 0.0
    %292 = vmatpush1.msra.mxu0 %v59
    %293 = vmatprep.subr.mxu0 0.0
    %294 = vmatpush1.msra.mxu0 %v58
    %295 = vmatprep.subr.mxu0 0.0
    %296 = vmatpush1.msra.mxu0 %v57
    %297 = vmatprep.subr.mxu0 0.0
    %298 = vmatpush1.msra.mxu0 %v56
    %299 = vmatprep.subr.mxu0 0.0
    %300 = vmatpush2.msra.mxu0 0.0
    %301 = vmatprep.subr.mxu0 0.0
    %302 = vmatpush2.msra.mxu0 0.0
    %303 = vmatprep.subr.mxu0 0.0
    %304 = vmatpush2.msra.mxu0 0.0
    %305 = vmatprep.subr.mxu0 0.0
    %306 = vmatpush2.msra.mxu0 0.0
    %307 = vmatprep.subr.mxu0 0.0
    %308 = vmatpush2.msra.mxu0 0.0
    %309 = vmatprep.subr.mxu0 0.0
    %310 = vmatpush2.msra.mxu0 0.0
    %311 = vmatprep.subr.mxu0 0.0
    %312 = vmatpush2.msra.mxu0 0.0
    %313 = vmatprep.subr.mxu0 0.0
    %314 = vmatpush2.msra.mxu0 0.0
    %315 = vmatprep.subr.mxu0 0.0
    %316 = vmatpush2.msra.mxu0 0.0
    %317 = vmatprep.subr.mxu0 0.0
    %318 = vmatpush2.msra.mxu0 0.0
    %319 = vmatprep.subr.mxu0 0.0
    %320 = vmatpush2.msra.mxu0 0.0
    %321 = vmatprep.subr.mxu0 0.0
    %322 = vmatpush2.msra.mxu0 0.0
    %323 = vmatprep.subr.mxu0 0.0
    %324 = vmatpush2.msra.mxu0 0.0
    %325 = vmatprep.subr.mxu0 0.0
    %326 = vmatpush2.msra.mxu0 0.0
    %327 = vmatprep.subr.mxu0 0.0
    %328 = vmatpush2.msra.mxu0 0.0
    %329 = vmatprep.subr.mxu0 0.0
    %330 = vmatpush2.msra.mxu0 0.0
    %331 = vmatprep.mubr.f32.mxu0 0.0
    %332 = vmatmul.mubr.f32.gmra.mxu0 %v265
    %v333 = vpop.f32.mrf.mxu0
    %v334 = vadd.f32 0.0, %v333
    %v335 = vpop.f32.mrf.mxu0
    %336 = vdwg.mxu0
    %v338 = vrot.slane %v334, 6
    %v340 = vadd.f32 %v142, %v338
    %v341 = vxor.u32 %v340, 2147483648
    %v342 = vmul.f32 %v341, 1.442695
    %v343 = vpow.pop %v342
    %v344 = vadd.f32 %v343, 1.0
    %v345 = vrcp.pop %v344
    %v346 = vmul.f32 1.0, %v345
    %v347 = vadd.f32 %v334, %v237
    %v349 = vrot.slane %v347, 6
    %350 = vrot.lane.b32.xlu0 %v349, 64
    %v351 = vpop.permute.xlu0 %350
    %v353 = vmul.f32 %v346, %v351
    %355 = vrot.lane.b32.xlu0 %v353, 64
    %v356 = vpop.permute.xlu0 %355
    %v358 = vadd.f32 %v142, %v356
    %v359 = vtanh.pop %v358
    %v360 = vsub.f32 1.0, %v346
    %362 = vrot.lane.b32.xlu0 %v359, 96
    %v363 = vpop.permute.xlu0 %362
    %v365 = vmul.f32 %v360, %v363
    %v366 = vrot.slane %v258, 6
    %v368 = vmul.f32 %v346, %v366
    %v369 = vadd.f32 %v365, %v368
    %371 = vrot.lane.b32.xlu0 %v369, 96
    %v372 = vpop.permute.xlu0 %371
    %vm374 = vcmask 257026
    %375 = vst.msk [vmem:[#allocation2] sm:$0xc] %vm374, %v372
    %v376 = vrot.slane %v369, 2
    %377 = vrot.lane.b32.xlu0 %v376, 96
    %v378 = vpop.permute.xlu0 %377
    %v379 = vsel %vm150, %v378, 0
    %381 = vmatprep.subr.mxu0 0.0
    %382 = vmatpush1.msra.mxu0 0.0
    %383 = vmatprep.subr.mxu0 0.0
    %384 = vmatpush1.msra.mxu0 0.0
    %385 = vmatprep.subr.mxu0 0.0
    %386 = vmatpush1.msra.mxu0 0.0
    %387 = vmatprep.subr.mxu0 0.0
    %388 = vmatpush1.msra.mxu0 0.0
    %389 = vmatprep.subr.mxu0 0.0
    %390 = vmatpush1.msra.mxu0 0.0
    %391 = vmatprep.subr.mxu0 0.0
    %392 = vmatpush1.msra.mxu0 0.0
    %393 = vmatprep.subr.mxu0 0.0
    %394 = vmatpush1.msra.mxu0 0.0
    %395 = vmatprep.subr.mxu0 0.0
    %396 = vmatpush1.msra.mxu0 0.0
    %397 = vmatprep.subr.mxu0 0.0
    %398 = vmatpush1.msra.mxu0 0.0
    %399 = vmatprep.subr.mxu0 0.0
    %400 = vmatpush1.msra.mxu0 0.0
    %401 = vmatprep.subr.mxu0 0.0
    %402 = vmatpush1.msra.mxu0 0.0
    %403 = vmatprep.subr.mxu0 0.0
    %404 = vmatpush1.msra.mxu0 0.0
    %405 = vmatprep.subr.mxu0 0.0
    %406 = vmatpush1.msra.mxu0 %v59
    %407 = vmatprep.subr.mxu0 0.0
    %408 = vmatpush1.msra.mxu0 %v58
    %409 = vmatprep.subr.mxu0 0.0
    %410 = vmatpush1.msra.mxu0 %v57
    %411 = vmatprep.subr.mxu0 0.0
    %412 = vmatpush1.msra.mxu0 %v56
    %413 = vmatprep.subr.mxu0 0.0
    %414 = vmatpush2.msra.mxu0 0.0
    %415 = vmatprep.subr.mxu0 0.0
    %416 = vmatpush2.msra.mxu0 0.0
    %417 = vmatprep.subr.mxu0 0.0
    %418 = vmatpush2.msra.mxu0 0.0
    %419 = vmatprep.subr.mxu0 0.0
    %420 = vmatpush2.msra.mxu0 0.0
    %421 = vmatprep.subr.mxu0 0.0
    %422 = vmatpush2.msra.mxu0 0.0
    %423 = vmatprep.subr.mxu0 0.0
    %424 = vmatpush2.msra.mxu0 0.0
    %425 = vmatprep.subr.mxu0 0.0
    %426 = vmatpush2.msra.mxu0 0.0
    %427 = vmatprep.subr.mxu0 0.0
    %428 = vmatpush2.msra.mxu0 0.0
    %429 = vmatprep.subr.mxu0 0.0
    %430 = vmatpush2.msra.mxu0 0.0
    %431 = vmatprep.subr.mxu0 0.0
    %432 = vmatpush2.msra.mxu0 0.0
    %433 = vmatprep.subr.mxu0 0.0
    %434 = vmatpush2.msra.mxu0 0.0
    %435 = vmatprep.subr.mxu0 0.0
    %436 = vmatpush2.msra.mxu0 0.0
    %437 = vmatprep.subr.mxu0 0.0
    %438 = vmatpush2.msra.mxu0 0.0
    %439 = vmatprep.subr.mxu0 0.0
    %440 = vmatpush2.msra.mxu0 0.0
    %441 = vmatprep.subr.mxu0 0.0
    %442 = vmatpush2.msra.mxu0 0.0
    %443 = vmatprep.subr.mxu0 0.0
    %444 = vmatpush2.msra.mxu0 0.0
    %445 = vmatprep.mubr.f32.mxu0 0.0
    %446 = vmatmul.mubr.f32.gmra.mxu0 %v379
    %v447 = vpop.f32.mrf.mxu0
    %v448 = vadd.f32 0.0, %v447
    %v449 = vpop.f32.mrf.mxu0
    %450 = vdwg.mxu0
    %v452 = vrot.slane %v448, 4
    %v454 = vadd.f32 %v142, %v452
    %v455 = vxor.u32 %v454, 2147483648
    %v456 = vmul.f32 %v455, 1.442695
    %v457 = vpow.pop %v456
    %v458 = vadd.f32 %v457, 1.0
    %v459 = vrcp.pop %v458
    %v460 = vmul.f32 1.0, %v459
    %v461 = vadd.f32 %v448, %v237
    %v463 = vrot.slane %v461, 4
    %464 = vrot.lane.b32.xlu0 %v463, 64
    %v465 = vpop.permute.xlu0 %464
    %v467 = vmul.f32 %v460, %v465
    %469 = vrot.lane.b32.xlu0 %v467, 64
    %v470 = vpop.permute.xlu0 %469
    %v472 = vadd.f32 %v142, %v470
    %v473 = vtanh.pop %v472
    %v474 = vsub.f32 1.0, %v460
    %476 = vrot.lane.b32.xlu0 %v473, 96
    %v477 = vpop.permute.xlu0 %476
    %v479 = vmul.f32 %v474, %v477
    %v480 = vrot.slane %v369, 6
    %v482 = vmul.f32 %v460, %v480
    %v483 = vadd.f32 %v479, %v482
    %485 = vrot.lane.b32.xlu0 %v483, 96
    %v486 = vpop.permute.xlu0 %485
    %vm488 = vcmask 259076
    %489 = vst.msk [vmem:[#allocation2] sm:$0x30] %vm488, %v486
    %v490 = vrot.slane %v483, 4
    %491 = vrot.lane.b32.xlu0 %v490, 96
    %v492 = vpop.permute.xlu0 %491
    %v493 = vsel %vm150, %v492, 0
    %495 = vmatprep.subr.mxu0 0.0
    %496 = vmatpush1.msra.mxu0 0.0
    %497 = vmatprep.subr.mxu0 0.0
    %498 = vmatpush1.msra.mxu0 0.0
    %499 = vmatprep.subr.mxu0 0.0
    %500 = vmatpush1.msra.mxu0 0.0
    %501 = vmatprep.subr.mxu0 0.0
    %502 = vmatpush1.msra.mxu0 0.0
    %503 = vmatprep.subr.mxu0 0.0
    %504 = vmatpush1.msra.mxu0 0.0
    %505 = vmatprep.subr.mxu0 0.0
    %506 = vmatpush1.msra.mxu0 0.0
    %507 = vmatprep.subr.mxu0 0.0
    %508 = vmatpush1.msra.mxu0 0.0
    %509 = vmatprep.subr.mxu0 0.0
    %510 = vmatpush1.msra.mxu0 0.0
    %511 = vmatprep.subr.mxu0 0.0
    %512 = vmatpush1.msra.mxu0 0.0
    %513 = vmatprep.subr.mxu0 0.0
    %514 = vmatpush1.msra.mxu0 0.0
    %515 = vmatprep.subr.mxu0 0.0
    %516 = vmatpush1.msra.mxu0 0.0
    %517 = vmatprep.subr.mxu0 0.0
    %518 = vmatpush1.msra.mxu0 0.0
    %519 = vmatprep.subr.mxu0 0.0
    %520 = vmatpush1.msra.mxu0 %v59
    %521 = vmatprep.subr.mxu0 0.0
    %522 = vmatpush1.msra.mxu0 %v58
    %523 = vmatprep.subr.mxu0 0.0
    %524 = vmatpush1.msra.mxu0 %v57
    %525 = vmatprep.subr.mxu0 0.0
    %526 = vmatpush1.msra.mxu0 %v56
    %527 = vmatprep.subr.mxu0 0.0
    %528 = vmatpush2.msra.mxu0 0.0
    %529 = vmatprep.subr.mxu0 0.0
    %530 = vmatpush2.msra.mxu0 0.0
    %531 = vmatprep.subr.mxu0 0.0
    %532 = vmatpush2.msra.mxu0 0.0
    %533 = vmatprep.subr.mxu0 0.0
    %534 = vmatpush2.msra.mxu0 0.0
    %535 = vmatprep.subr.mxu0 0.0
    %536 = vmatpush2.msra.mxu0 0.0
    %537 = vmatprep.subr.mxu0 0.0
    %538 = vmatpush2.msra.mxu0 0.0
    %539 = vmatprep.subr.mxu0 0.0
    %540 = vmatpush2.msra.mxu0 0.0
    %541 = vmatprep.subr.mxu0 0.0
    %542 = vmatpush2.msra.mxu0 0.0
    %543 = vmatprep.subr.mxu0 0.0
    %544 = vmatpush2.msra.mxu0 0.0
    %545 = vmatprep.subr.mxu0 0.0
    %546 = vmatpush2.msra.mxu0 0.0
    %547 = vmatprep.subr.mxu0 0.0
    %548 = vmatpush2.msra.mxu0 0.0
    %549 = vmatprep.subr.mxu0 0.0
    %550 = vmatpush2.msra.mxu0 0.0
    %551 = vmatprep.subr.mxu0 0.0
    %552 = vmatpush2.msra.mxu0 0.0
    %553 = vmatprep.subr.mxu0 0.0
    %554 = vmatpush2.msra.mxu0 0.0
    %555 = vmatprep.subr.mxu0 0.0
    %556 = vmatpush2.msra.mxu0 0.0
    %557 = vmatprep.subr.mxu0 0.0
    %558 = vmatpush2.msra.mxu0 0.0
    %559 = vmatprep.mubr.f32.mxu0 0.0
    %560 = vmatmul.mubr.f32.gmra.mxu0 %v493
    %v561 = vpop.f32.mrf.mxu0
    %v562 = vadd.f32 0.0, %v561
    %v563 = vpop.f32.mrf.mxu0
    %564 = vdwg.mxu0
    %v566 = vrot.slane %v562, 2
    %v568 = vadd.f32 %v142, %v566
    %v569 = vxor.u32 %v568, 2147483648
    %v570 = vmul.f32 %v569, 1.442695
    %v571 = vpow.pop %v570
    %v572 = vadd.f32 %v571, 1.0
    %v573 = vrcp.pop %v572
    %v574 = vmul.f32 1.0, %v573
    %v575 = vadd.f32 %v562, %v237
    %v577 = vrot.slane %v575, 2
    %578 = vrot.lane.b32.xlu0 %v577, 64
    %v579 = vpop.permute.xlu0 %578
    %v581 = vmul.f32 %v574, %v579
    %583 = vrot.lane.b32.xlu0 %v581, 64
    %v584 = vpop.permute.xlu0 %583
    %v586 = vadd.f32 %v142, %v584
    %v587 = vtanh.pop %v586
    %v588 = vsub.f32 1.0, %v574
    %590 = vrot.lane.b32.xlu0 %v587, 96
    %v591 = vpop.permute.xlu0 %590
    %v593 = vmul.f32 %v588, %v591
    %v594 = vrot.slane %v483, 6
    %v596 = vmul.f32 %v574, %v594
    %v597 = vadd.f32 %v593, %v596
    %599 = vrot.lane.b32.xlu0 %v597, 96
    %v600 = vpop.permute.xlu0 %599
    %vm602 = vcmask 261126
    %603 = vst.msk [vmem:[#allocation2] sm:$0xc0] %vm602, %v600
    %v604 = vrot.slane %v597, 6
    %605 = vrot.lane.b32.xlu0 %v604, 96
    %v606 = vpop.permute.xlu0 %605
    %v607 = vsel %vm150, %v606, 0
    %609 = vmatprep.subr.mxu0 0.0
    %610 = vmatpush1.msra.mxu0 0.0
    %611 = vmatprep.subr.mxu0 0.0
    %612 = vmatpush1.msra.mxu0 0.0
    %613 = vmatprep.subr.mxu0 0.0
    %614 = vmatpush1.msra.mxu0 0.0
    %615 = vmatprep.subr.mxu0 0.0
    %616 = vmatpush1.msra.mxu0 0.0
    %617 = vmatprep.subr.mxu0 0.0
    %618 = vmatpush1.msra.mxu0 0.0
    %619 = vmatprep.subr.mxu0 0.0
    %620 = vmatpush1.msra.mxu0 0.0
    %621 = vmatprep.subr.mxu0 0.0
    %622 = vmatpush1.msra.mxu0 0.0
    %623 = vmatprep.subr.mxu0 0.0
    %624 = vmatpush1.msra.mxu0 0.0
    %625 = vmatprep.subr.mxu0 0.0
    %626 = vmatpush1.msra.mxu0 0.0
    %627 = vmatprep.subr.mxu0 0.0
    %628 = vmatpush1.msra.mxu0 0.0
    %629 = vmatprep.subr.mxu0 0.0
    %630 = vmatpush1.msra.mxu0 0.0
    %631 = vmatprep.subr.mxu0 0.0
    %632 = vmatpush1.msra.mxu0 0.0
    %633 = vmatprep.subr.mxu0 0.0
    %634 = vmatpush1.msra.mxu0 %v59
    %635 = vmatprep.subr.mxu0 0.0
    %636 = vmatpush1.msra.mxu0 %v58
    %637 = vmatprep.subr.mxu0 0.0
    %638 = vmatpush1.msra.mxu0 %v57
    %639 = vmatprep.subr.mxu0 0.0
    %640 = vmatpush1.msra.mxu0 %v56
    %641 = vmatprep.subr.mxu0 0.0
    %642 = vmatpush2.msra.mxu0 0.0
    %643 = vmatprep.subr.mxu0 0.0
    %644 = vmatpush2.msra.mxu0 0.0
    %645 = vmatprep.subr.mxu0 0.0
    %646 = vmatpush2.msra.mxu0 0.0
    %647 = vmatprep.subr.mxu0 0.0
    %648 = vmatpush2.msra.mxu0 0.0
    %649 = vmatprep.subr.mxu0 0.0
    %650 = vmatpush2.msra.mxu0 0.0
    %651 = vmatprep.subr.mxu0 0.0
    %652 = vmatpush2.msra.mxu0 0.0
    %653 = vmatprep.subr.mxu0 0.0
    %654 = vmatpush2.msra.mxu0 0.0
    %655 = vmatprep.subr.mxu0 0.0
    %656 = vmatpush2.msra.mxu0 0.0
    %657 = vmatprep.subr.mxu0 0.0
    %658 = vmatpush2.msra.mxu0 0.0
    %659 = vmatprep.subr.mxu0 0.0
    %660 = vmatpush2.msra.mxu0 0.0
    %661 = vmatprep.subr.mxu0 0.0
    %662 = vmatpush2.msra.mxu0 0.0
    %663 = vmatprep.subr.mxu0 0.0
    %664 = vmatpush2.msra.mxu0 0.0
    %665 = vmatprep.subr.mxu0 0.0
    %666 = vmatpush2.msra.mxu0 0.0
    %667 = vmatprep.subr.mxu0 0.0
    %668 = vmatpush2.msra.mxu0 0.0
    %669 = vmatprep.subr.mxu0 0.0
    %670 = vmatpush2.msra.mxu0 0.0
    %671 = vmatprep.subr.mxu0 0.0
    %672 = vmatpush2.msra.mxu0 0.0
    %673 = vmatprep.mubr.f32.mxu0 0.0
    %674 = vmatmul.mubr.f32.gmra.mxu0 %v607
    %v675 = vpop.f32.mrf.mxu0
    %v676 = vadd.f32 0.0, %v675
    %v677 = vpop.f32.mrf.mxu0
    %678 = vdwg.mxu0
    %v679 = vadd.f32 %v147, %v676
    %v680 = vxor.u32 %v679, 2147483648
    %v681 = vmul.f32 %v680, 1.442695
    %v682 = vpow.pop %v681
    %v683 = vadd.f32 %v682, 1.0
    %v684 = vrcp.pop %v683
    %v685 = vmul.f32 1.0, %v684
    %v686 = vadd.f32 %v676, %v237
    %688 = vrot.lane.b32.xlu0 %v686, 64
    %v689 = vpop.permute.xlu0 %688
    %v691 = vmul.f32 %v685, %v689
    %693 = vrot.lane.b32.xlu0 %v691, 64
    %v694 = vpop.permute.xlu0 %693
    %v696 = vadd.f32 %v147, %v694
    %v697 = vtanh.pop %v696
    %v698 = vsub.f32 1.0, %v685
    %700 = vrot.lane.b32.xlu0 %v697, 96
    %v701 = vpop.permute.xlu0 %700
    %v703 = vmul.f32 %v698, %v701
    %v705 = vmul.f32 %v685, %v604
    %v706 = vadd.f32 %v703, %v705
    %708 = vrot.lane.b32.xlu0 %v706, 96
    %v709 = vpop.permute.xlu0 %708
    %711 = vst.msk [vmem:[#allocation2 + $0x8] sm:$0x3] %vm263, %v709
    %v712 = vsel %vm150, %v709, 0
    %714 = vmatprep.subr.mxu0 0.0
    %715 = vmatpush1.msra.mxu0 0.0
    %716 = vmatprep.subr.mxu0 0.0
    %717 = vmatpush1.msra.mxu0 0.0
    %718 = vmatprep.subr.mxu0 0.0
    %719 = vmatpush1.msra.mxu0 0.0
    %720 = vmatprep.subr.mxu0 0.0
    %721 = vmatpush1.msra.mxu0 0.0
    %722 = vmatprep.subr.mxu0 0.0
    %723 = vmatpush1.msra.mxu0 0.0
    %724 = vmatprep.subr.mxu0 0.0
    %725 = vmatpush1.msra.mxu0 0.0
    %726 = vmatprep.subr.mxu0 0.0
    %727 = vmatpush1.msra.mxu0 0.0
    %728 = vmatprep.subr.mxu0 0.0
    %729 = vmatpush1.msra.mxu0 0.0
    %730 = vmatprep.subr.mxu0 0.0
    %731 = vmatpush1.msra.mxu0 0.0
    %732 = vmatprep.subr.mxu0 0.0
    %733 = vmatpush1.msra.mxu0 0.0
    %734 = vmatprep.subr.mxu0 0.0
    %735 = vmatpush1.msra.mxu0 0.0
    %736 = vmatprep.subr.mxu0 0.0
    %737 = vmatpush1.msra.mxu0 0.0
    %738 = vmatprep.subr.mxu0 0.0
    %739 = vmatpush1.msra.mxu0 %v59
    %740 = vmatprep.subr.mxu0 0.0
    %741 = vmatpush1.msra.mxu0 %v58
    %742 = vmatprep.subr.mxu0 0.0
    %743 = vmatpush1.msra.mxu0 %v57
    %744 = vmatprep.subr.mxu0 0.0
    %745 = vmatpush1.msra.mxu0 %v56
    %746 = vmatprep.subr.mxu0 0.0
    %747 = vmatpush2.msra.mxu0 0.0
    %748 = vmatprep.subr.mxu0 0.0
    %749 = vmatpush2.msra.mxu0 0.0
    %750 = vmatprep.subr.mxu0 0.0
    %751 = vmatpush2.msra.mxu0 0.0
    %752 = vmatprep.subr.mxu0 0.0
    %753 = vmatpush2.msra.mxu0 0.0
    %754 = vmatprep.subr.mxu0 0.0
    %755 = vmatpush2.msra.mxu0 0.0
    %756 = vmatprep.subr.mxu0 0.0
    %757 = vmatpush2.msra.mxu0 0.0
    %758 = vmatprep.subr.mxu0 0.0
    %759 = vmatpush2.msra.mxu0 0.0
    %760 = vmatprep.subr.mxu0 0.0
    %761 = vmatpush2.msra.mxu0 0.0
    %762 = vmatprep.subr.mxu0 0.0
    %763 = vmatpush2.msra.mxu0 0.0
    %764 = vmatprep.subr.mxu0 0.0
    %765 = vmatpush2.msra.mxu0 0.0
    %766 = vmatprep.subr.mxu0 0.0
    %767 = vmatpush2.msra.mxu0 0.0
    %768 = vmatprep.subr.mxu0 0.0
    %769 = vmatpush2.msra.mxu0 0.0
    %770 = vmatprep.subr.mxu0 0.0
    %771 = vmatpush2.msra.mxu0 0.0
    %772 = vmatprep.subr.mxu0 0.0
    %773 = vmatpush2.msra.mxu0 0.0
    %774 = vmatprep.subr.mxu0 0.0
    %775 = vmatpush2.msra.mxu0 0.0
    %776 = vmatprep.subr.mxu0 0.0
    %777 = vmatpush2.msra.mxu0 0.0
    %778 = vmatprep.mubr.f32.mxu0 0.0
    %779 = vmatmul.mubr.f32.gmra.mxu0 %v712
    %v780 = vpop.f32.mrf.mxu0
    %v781 = vadd.f32 0.0, %v780
    %v782 = vpop.f32.mrf.mxu0
    %783 = vdwg.mxu0
    %v785 = vrot.slane %v781, 6
    %v787 = vadd.f32 %v147, %v785
    %v788 = vxor.u32 %v787, 2147483648
    %v789 = vmul.f32 %v788, 1.442695
    %v790 = vpow.pop %v789
    %v791 = vadd.f32 %v790, 1.0
    %v792 = vrcp.pop %v791
    %v793 = vmul.f32 1.0, %v792
    %v794 = vadd.f32 %v781, %v237
    %v796 = vrot.slane %v794, 6
    %797 = vrot.lane.b32.xlu0 %v796, 64
    %v798 = vpop.permute.xlu0 %797
    %v800 = vmul.f32 %v793, %v798
    %802 = vrot.lane.b32.xlu0 %v800, 64
    %v803 = vpop.permute.xlu0 %802
    %v805 = vadd.f32 %v147, %v803
    %v806 = vtanh.pop %v805
    %v807 = vsub.f32 1.0, %v793
    %809 = vrot.lane.b32.xlu0 %v806, 96
    %v810 = vpop.permute.xlu0 %809
    %v812 = vmul.f32 %v807, %v810
    %v813 = vrot.slane %v706, 6
    %v815 = vmul.f32 %v793, %v813
    %v816 = vadd.f32 %v812, %v815
    %818 = vrot.lane.b32.xlu0 %v816, 96
    %v819 = vpop.permute.xlu0 %818
    %821 = vst.msk [vmem:[#allocation2 + $0x8] sm:$0xc] %vm374, %v819
    %v822 = vrot.slane %v816, 2
    %823 = vrot.lane.b32.xlu0 %v822, 96
    %v824 = vpop.permute.xlu0 %823
    %v825 = vsel %vm150, %v824, 0
    %827 = vmatprep.subr.mxu0 0.0
    %828 = vmatpush1.msra.mxu0 0.0
    %829 = vmatprep.subr.mxu0 0.0
    %830 = vmatpush1.msra.mxu0 0.0
    %831 = vmatprep.subr.mxu0 0.0
    %832 = vmatpush1.msra.mxu0 0.0
    %833 = vmatprep.subr.mxu0 0.0
    %834 = vmatpush1.msra.mxu0 0.0
    %835 = vmatprep.subr.mxu0 0.0
    %836 = vmatpush1.msra.mxu0 0.0
    %837 = vmatprep.subr.mxu0 0.0
    %838 = vmatpush1.msra.mxu0 0.0
    %839 = vmatprep.subr.mxu0 0.0
    %840 = vmatpush1.msra.mxu0 0.0
    %841 = vmatprep.subr.mxu0 0.0
    %842 = vmatpush1.msra.mxu0 0.0
    %843 = vmatprep.subr.mxu0 0.0
    %844 = vmatpush1.msra.mxu0 0.0
    %845 = vmatprep.subr.mxu0 0.0
    %846 = vmatpush1.msra.mxu0 0.0
    %847 = vmatprep.subr.mxu0 0.0
    %848 = vmatpush1.msra.mxu0 0.0
    %849 = vmatprep.subr.mxu0 0.0
    %850 = vmatpush1.msra.mxu0 0.0
    %851 = vmatprep.subr.mxu0 0.0
    %852 = vmatpush1.msra.mxu0 %v59
    %853 = vmatprep.subr.mxu0 0.0
    %854 = vmatpush1.msra.mxu0 %v58
    %855 = vmatprep.subr.mxu0 0.0
    %856 = vmatpush1.msra.mxu0 %v57
    %857 = vmatprep.subr.mxu0 0.0
    %858 = vmatpush1.msra.mxu0 %v56
    %859 = vmatprep.subr.mxu0 0.0
    %860 = vmatpush2.msra.mxu0 0.0
    %861 = vmatprep.subr.mxu0 0.0
    %862 = vmatpush2.msra.mxu0 0.0
    %863 = vmatprep.subr.mxu0 0.0
    %864 = vmatpush2.msra.mxu0 0.0
    %865 = vmatprep.subr.mxu0 0.0
    %866 = vmatpush2.msra.mxu0 0.0
    %867 = vmatprep.subr.mxu0 0.0
    %868 = vmatpush2.msra.mxu0 0.0
    %869 = vmatprep.subr.mxu0 0.0
    %870 = vmatpush2.msra.mxu0 0.0
    %871 = vmatprep.subr.mxu0 0.0
    %872 = vmatpush2.msra.mxu0 0.0
    %873 = vmatprep.subr.mxu0 0.0
    %874 = vmatpush2.msra.mxu0 0.0
    %875 = vmatprep.subr.mxu0 0.0
    %876 = vmatpush2.msra.mxu0 0.0
    %877 = vmatprep.subr.mxu0 0.0
    %878 = vmatpush2.msra.mxu0 0.0
    %879 = vmatprep.subr.mxu0 0.0
    %880 = vmatpush2.msra.mxu0 0.0
    %881 = vmatprep.subr.mxu0 0.0
    %882 = vmatpush2.msra.mxu0 0.0
    %883 = vmatprep.subr.mxu0 0.0
    %884 = vmatpush2.msra.mxu0 0.0
    %885 = vmatprep.subr.mxu0 0.0
    %886 = vmatpush2.msra.mxu0 0.0
    %887 = vmatprep.subr.mxu0 0.0
    %888 = vmatpush2.msra.mxu0 0.0
    %889 = vmatprep.subr.mxu0 0.0
    %890 = vmatpush2.msra.mxu0 0.0
    %891 = vmatprep.mubr.f32.mxu0 0.0
    %892 = vmatmul.mubr.f32.gmra.mxu0 %v825
    %v893 = vpop.f32.mrf.mxu0
    %v894 = vadd.f32 0.0, %v893
    %v895 = vpop.f32.mrf.mxu0
    %896 = vdwg.mxu0
    %v898 = vrot.slane %v894, 4
    %v900 = vadd.f32 %v147, %v898
    %v901 = vxor.u32 %v900, 2147483648
    %v902 = vmul.f32 %v901, 1.442695
    %v903 = vpow.pop %v902
    %v904 = vadd.f32 %v903, 1.0
    %v905 = vrcp.pop %v904
    %v906 = vmul.f32 1.0, %v905
    %v907 = vadd.f32 %v894, %v237
    %v909 = vrot.slane %v907, 4
    %910 = vrot.lane.b32.xlu0 %v909, 64
    %v911 = vpop.permute.xlu0 %910
    %v913 = vmul.f32 %v906, %v911
    %915 = vrot.lane.b32.xlu0 %v913, 64
    %v916 = vpop.permute.xlu0 %915
    %v918 = vadd.f32 %v147, %v916
    %v919 = vtanh.pop %v918
    %v920 = vsub.f32 1.0, %v906
    %922 = vrot.lane.b32.xlu0 %v919, 96
    %v923 = vpop.permute.xlu0 %922
    %v925 = vmul.f32 %v920, %v923
    %v926 = vrot.slane %v816, 6
    %v928 = vmul.f32 %v906, %v926
    %v929 = vadd.f32 %v925, %v928
    %931 = vrot.lane.b32.xlu0 %v929, 96
    %v932 = vpop.permute.xlu0 %931
    %934 = vst.msk [vmem:[#allocation2 + $0x8] sm:$0x30] %vm488, %v932
    %v935 = vrot.slane %v929, 4
    %936 = vrot.lane.b32.xlu0 %v935, 96
    %v937 = vpop.permute.xlu0 %936
    %v938 = vsel %vm150, %v937, 0
    %940 = vmatprep.subr.mxu0 0.0
    %941 = vmatpush1.msra.mxu0 0.0
    %942 = vmatprep.subr.mxu0 0.0
    %943 = vmatpush1.msra.mxu0 0.0
    %944 = vmatprep.subr.mxu0 0.0
    %945 = vmatpush1.msra.mxu0 0.0
    %946 = vmatprep.subr.mxu0 0.0
    %947 = vmatpush1.msra.mxu0 0.0
    %948 = vmatprep.subr.mxu0 0.0
    %949 = vmatpush1.msra.mxu0 0.0
    %950 = vmatprep.subr.mxu0 0.0
    %951 = vmatpush1.msra.mxu0 0.0
    %952 = vmatprep.subr.mxu0 0.0
    %953 = vmatpush1.msra.mxu0 0.0
    %954 = vmatprep.subr.mxu0 0.0
    %955 = vmatpush1.msra.mxu0 0.0
    %956 = vmatprep.subr.mxu0 0.0
    %957 = vmatpush1.msra.mxu0 0.0
    %958 = vmatprep.subr.mxu0 0.0
    %959 = vmatpush1.msra.mxu0 0.0
    %960 = vmatprep.subr.mxu0 0.0
    %961 = vmatpush1.msra.mxu0 0.0
    %962 = vmatprep.subr.mxu0 0.0
    %963 = vmatpush1.msra.mxu0 0.0
    %964 = vmatprep.subr.mxu0 0.0
    %965 = vmatpush1.msra.mxu0 %v59
    %966 = vmatprep.subr.mxu0 0.0
    %967 = vmatpush1.msra.mxu0 %v58
    %968 = vmatprep.subr.mxu0 0.0
    %969 = vmatpush1.msra.mxu0 %v57
    %970 = vmatprep.subr.mxu0 0.0
    %971 = vmatpush1.msra.mxu0 %v56
    %972 = vmatprep.subr.mxu0 0.0
    %973 = vmatpush2.msra.mxu0 0.0
    %974 = vmatprep.subr.mxu0 0.0
    %975 = vmatpush2.msra.mxu0 0.0
    %976 = vmatprep.subr.mxu0 0.0
    %977 = vmatpush2.msra.mxu0 0.0
    %978 = vmatprep.subr.mxu0 0.0
    %979 = vmatpush2.msra.mxu0 0.0
    %980 = vmatprep.subr.mxu0 0.0
    %981 = vmatpush2.msra.mxu0 0.0
    %982 = vmatprep.subr.mxu0 0.0
    %983 = vmatpush2.msra.mxu0 0.0
    %984 = vmatprep.subr.mxu0 0.0
    %985 = vmatpush2.msra.mxu0 0.0
    %986 = vmatprep.subr.mxu0 0.0
    %987 = vmatpush2.msra.mxu0 0.0
    %988 = vmatprep.subr.mxu0 0.0
    %989 = vmatpush2.msra.mxu0 0.0
    %990 = vmatprep.subr.mxu0 0.0
    %991 = vmatpush2.msra.mxu0 0.0
    %992 = vmatprep.subr.mxu0 0.0
    %993 = vmatpush2.msra.mxu0 0.0
    %994 = vmatprep.subr.mxu0 0.0
    %995 = vmatpush2.msra.mxu0 0.0
    %996 = vmatprep.subr.mxu0 0.0
    %997 = vmatpush2.msra.mxu0 0.0
    %998 = vmatprep.subr.mxu0 0.0
    %999 = vmatpush2.msra.mxu0 0.0
    %1000 = vmatprep.subr.mxu0 0.0
    %1001 = vmatpush2.msra.mxu0 0.0
    %1002 = vmatprep.subr.mxu0 0.0
    %1003 = vmatpush2.msra.mxu0 0.0
    %1004 = vmatprep.mubr.f32.mxu0 0.0
    %1005 = vmatmul.mubr.f32.gmra.mxu0 %v938
    %v1006 = vpop.f32.mrf.mxu0
    %v1007 = vadd.f32 0.0, %v1006
    %v1008 = vpop.f32.mrf.mxu0
    %1009 = vdwg.mxu0
    %v1011 = vrot.slane %v1007, 2
    %v1013 = vadd.f32 %v147, %v1011
    %v1014 = vxor.u32 %v1013, 2147483648
    %v1015 = vmul.f32 %v1014, 1.442695
    %v1016 = vpow.pop %v1015
    %v1017 = vadd.f32 %v1016, 1.0
    %v1018 = vrcp.pop %v1017
    %v1019 = vmul.f32 1.0, %v1018
    %v1020 = vadd.f32 %v1007, %v237
    %v1022 = vrot.slane %v1020, 2
    %1023 = vrot.lane.b32.xlu0 %v1022, 64
    %v1024 = vpop.permute.xlu0 %1023
    %v1026 = vmul.f32 %v1019, %v1024
    %1028 = vrot.lane.b32.xlu0 %v1026, 64
    %v1029 = vpop.permute.xlu0 %1028
    %v1031 = vadd.f32 %v147, %v1029
    %v1032 = vtanh.pop %v1031
    %v1033 = vsub.f32 1.0, %v1019
    %1035 = vrot.lane.b32.xlu0 %v1032, 96
    %v1036 = vpop.permute.xlu0 %1035
    %v1038 = vmul.f32 %v1033, %v1036
    %v1039 = vrot.slane %v929, 6
    %v1041 = vmul.f32 %v1019, %v1039
    %v1042 = vadd.f32 %v1038, %v1041
    %1044 = vrot.lane.b32.xlu0 %v1042, 96
    %v1045 = vpop.permute.xlu0 %1044
    %1047 = vst.msk [vmem:[#allocation2 + $0x8] sm:$0xc0] %vm602, %v1045
    %v1048 = vld [vmem:[#allocation2] sm:$0xff]
    %v1049 = vld [vmem:[#allocation2 + $0x8] sm:$0xff]
    %v1050 = vld [vmem:[%s5] sm:$0xff]
    %v1051 = vld [vmem:[%s5 + $0x8] sm:$0xff]
    %v1052 = vld [vmem:[%s5 + $0x10] sm:$0xff]
    %v1053 = vld [vmem:[%s5 + $0x18] sm:$0xff]
    %v1054 = vld [vmem:[#allocation3] sm:$0xff]
    %v1055 = vld [vmem:[#allocation3 + $0x8] sm:$0xff]
    %v1056 = vld [vmem:[#allocation3 + $0x10] sm:$0xff]
    %v1057 = vld [vmem:[#allocation3 + $0x18] sm:$0xff]
    %v1058 = vld [vmem:[%s7] sm:$0x1]
    %v1059 = vld [vmem:[%s8] sm:$0x1]
    %v1061 = vlaneseq
    %v1062 = vshrl.u32 %v1061, 7
    %v1063 = vsub.s32 0, %v1062
    %v1064 = vrot.slane %v1058, %v1063
    %v1067 = vsel %vm150, %v1048, 0
    %v1070 = vsel %vm150, %v1049, 0
    %1072 = vmatprep.subr.mxu0 0.0
    %1073 = vmatpush1.msra.mxu0 0.0
    %1074 = vmatprep.subr.mxu0 0.0
    %1075 = vmatpush1.msra.mxu0 0.0
    %1076 = vmatprep.subr.mxu0 0.0
    %1077 = vmatpush1.msra.mxu0 0.0
    %1078 = vmatprep.subr.mxu0 0.0
    %1079 = vmatpush1.msra.mxu0 0.0
    %1080 = vmatprep.subr.mxu0 0.0
    %1081 = vmatpush1.msra.mxu0 0.0
    %1082 = vmatprep.subr.mxu0 0.0
    %1083 = vmatpush1.msra.mxu0 0.0
    %1084 = vmatprep.subr.mxu0 0.0
    %1085 = vmatpush1.msra.mxu0 0.0
    %1086 = vmatprep.subr.mxu0 0.0
    %1087 = vmatpush1.msra.mxu0 0.0
    %1088 = vmatprep.subr.mxu0 0.0
    %1089 = vmatpush1.msra.mxu0 0.0
    %1090 = vmatprep.subr.mxu0 0.0
    %1091 = vmatpush1.msra.mxu0 0.0
    %1092 = vmatprep.subr.mxu0 0.0
    %1093 = vmatpush1.msra.mxu0 0.0
    %1094 = vmatprep.subr.mxu0 0.0
    %1095 = vmatpush1.msra.mxu0 0.0
    %1096 = vmatprep.subr.mxu0 0.0
    %1097 = vmatpush1.msra.mxu0 %v1053
    %1098 = vmatprep.subr.mxu0 0.0
    %1099 = vmatpush1.msra.mxu0 %v1052
    %1100 = vmatprep.subr.mxu0 0.0
    %1101 = vmatpush1.msra.mxu0 %v1051
    %1102 = vmatprep.subr.mxu0 0.0
    %1103 = vmatpush1.msra.mxu0 %v1050
    %1104 = vmatprep.subr.mxu0 0.0
    %1105 = vmatpush2.msra.mxu0 0.0
    %1106 = vmatprep.subr.mxu0 0.0
    %1107 = vmatpush2.msra.mxu0 0.0
    %1108 = vmatprep.subr.mxu0 0.0
    %1109 = vmatpush2.msra.mxu0 0.0
    %1110 = vmatprep.subr.mxu0 0.0
    %1111 = vmatpush2.msra.mxu0 0.0
    %1112 = vmatprep.subr.mxu0 0.0
    %1113 = vmatpush2.msra.mxu0 0.0
    %1114 = vmatprep.subr.mxu0 0.0
    %1115 = vmatpush2.msra.mxu0 0.0
    %1116 = vmatprep.subr.mxu0 0.0
    %1117 = vmatpush2.msra.mxu0 0.0
    %1118 = vmatprep.subr.mxu0 0.0
    %1119 = vmatpush2.msra.mxu0 0.0
    %1120 = vmatprep.subr.mxu0 0.0
    %1121 = vmatpush2.msra.mxu0 0.0
    %1122 = vmatprep.subr.mxu0 0.0
    %1123 = vmatpush2.msra.mxu0 0.0
    %1124 = vmatprep.subr.mxu0 0.0
    %1125 = vmatpush2.msra.mxu0 0.0
    %1126 = vmatprep.subr.mxu0 0.0
    %1127 = vmatpush2.msra.mxu0 0.0
    %1128 = vmatprep.subr.mxu0 0.0
    %1129 = vmatpush2.msra.mxu0 0.0
    %1130 = vmatprep.subr.mxu0 0.0
    %1131 = vmatpush2.msra.mxu0 0.0
    %1132 = vmatprep.subr.mxu0 0.0
    %1133 = vmatpush2.msra.mxu0 0.0
    %1134 = vmatprep.subr.mxu0 0.0
    %1135 = vmatpush2.msra.mxu0 0.0
    %1136 = vmatprep.mubr.f32.mxu0 0.0
    %1137 = vmatmul.mubr.f32.gmra.mxu0 %v1067
    %v1138 = vpop.f32.mrf.mxu0
    %v1139 = vadd.f32 %v1064, %v1138
    %v1140 = vpop.f32.mrf.mxu0
    %1141 = vmatprep.mubr.f32.mxu0 0.0
    %1142 = vmatmul.mubr.f32.gmra.mxu0 %v1070
    %v1143 = vpop.f32.mrf.mxu0
    %v1144 = vadd.f32 %v1064, %v1143
    %v1145 = vpop.f32.mrf.mxu0
    %1146 = vdwg.mxu0
    %1147 = vmatprep.subr.mxu0 0.0
    %1148 = vmatpush1.msra.mxu0 0.0
    %1149 = vmatprep.subr.mxu0 0.0
    %1150 = vmatpush1.msra.mxu0 0.0
    %1151 = vmatprep.subr.mxu0 0.0
    %1152 = vmatpush1.msra.mxu0 0.0
    %1153 = vmatprep.subr.mxu0 0.0
    %1154 = vmatpush1.msra.mxu0 0.0
    %1155 = vmatprep.subr.mxu0 0.0
    %1156 = vmatpush1.msra.mxu0 0.0
    %1157 = vmatprep.subr.mxu0 0.0
    %1158 = vmatpush1.msra.mxu0 0.0
    %1159 = vmatprep.subr.mxu0 0.0
    %1160 = vmatpush1.msra.mxu0 0.0
    %1161 = vmatprep.subr.mxu0 0.0
    %1162 = vmatpush1.msra.mxu0 0.0
    %1163 = vmatprep.subr.mxu0 0.0
    %1164 = vmatpush1.msra.mxu0 0.0
    %1165 = vmatprep.subr.mxu0 0.0
    %1166 = vmatpush1.msra.mxu0 0.0
    %1167 = vmatprep.subr.mxu0 0.0
    %1168 = vmatpush1.msra.mxu0 0.0
    %1169 = vmatprep.subr.mxu0 0.0
    %1170 = vmatpush1.msra.mxu0 0.0
    %1171 = vmatprep.subr.mxu0 0.0
    %1172 = vmatpush1.msra.mxu0 %v1057
    %1173 = vmatprep.subr.mxu0 0.0
    %1174 = vmatpush1.msra.mxu0 %v1056
    %1175 = vmatprep.subr.mxu0 0.0
    %1176 = vmatpush1.msra.mxu0 %v1055
    %1177 = vmatprep.subr.mxu0 0.0
    %1178 = vmatpush1.msra.mxu0 %v1054
    %1179 = vmatprep.subr.mxu0 0.0
    %1180 = vmatpush2.msra.mxu0 0.0
    %1181 = vmatprep.subr.mxu0 0.0
    %1182 = vmatpush2.msra.mxu0 0.0
    %1183 = vmatprep.subr.mxu0 0.0
    %1184 = vmatpush2.msra.mxu0 0.0
    %1185 = vmatprep.subr.mxu0 0.0
    %1186 = vmatpush2.msra.mxu0 0.0
    %1187 = vmatprep.subr.mxu0 0.0
    %1188 = vmatpush2.msra.mxu0 0.0
    %1189 = vmatprep.subr.mxu0 0.0
    %1190 = vmatpush2.msra.mxu0 0.0
    %1191 = vmatprep.subr.mxu0 0.0
    %1192 = vmatpush2.msra.mxu0 0.0
    %1193 = vmatprep.subr.mxu0 0.0
    %1194 = vmatpush2.msra.mxu0 0.0
    %1195 = vmatprep.subr.mxu0 0.0
    %1196 = vmatpush2.msra.mxu0 0.0
    %1197 = vmatprep.subr.mxu0 0.0
    %1198 = vmatpush2.msra.mxu0 0.0
    %1199 = vmatprep.subr.mxu0 0.0
    %1200 = vmatpush2.msra.mxu0 0.0
    %1201 = vmatprep.subr.mxu0 0.0
    %1202 = vmatpush2.msra.mxu0 0.0
    %1203 = vmatprep.subr.mxu0 0.0
    %1204 = vmatpush2.msra.mxu0 0.0
    %1205 = vmatprep.subr.mxu0 0.0
    %1206 = vmatpush2.msra.mxu0 0.0
    %1207 = vmatprep.subr.mxu0 0.0
    %1208 = vmatpush2.msra.mxu0 0.0
    %1209 = vmatprep.subr.mxu0 0.0
    %1210 = vmatpush2.msra.mxu0 0.0
    %1211 = vmatprep.mubr.f32.mxu0 0.0
    %1212 = vmatmul.mubr.f32.gmra.mxu0 %v152
    %v1213 = vpop.f32.mrf.mxu0
    %v1214 = vadd.f32 0.0, %v1213
    %v1215 = vpop.f32.mrf.mxu0
    %1216 = vdwg.mxu0
    %v1217 = vadd.f32 %v1139, %v1214
    %v1218 = vxor.u32 %v1217, 2147483648
    %v1219 = vmul.f32 %v1218, 1.442695
    %v1220 = vpow.pop %v1219
    %v1221 = vadd.f32 %v1220, 1.0
    %v1222 = vrcp.pop %v1221
    %v1223 = vmul.f32 1.0, %v1222
    %v1225 = vlaneseq
    %v1226 = vshrl.u32 %v1225, 7
    %v1227 = vsub.s32 0, %v1226
    %v1228 = vrot.slane %v1059, %v1227
    %1229 = vrot.lane.b32.xlu0 %v1228, 64
    %v1230 = vpop.permute.xlu0 %1229
    %v1232 = vadd.f32 %v1214, %v1230
    %1234 = vrot.lane.b32.xlu0 %v1232, 64
    %v1235 = vpop.permute.xlu0 %1234
    %v1237 = vmul.f32 %v1223, %v1235
    %1239 = vrot.lane.b32.xlu0 %v1237, 64
    %v1240 = vpop.permute.xlu0 %1239
    %v1242 = vadd.f32 %v1139, %v1240
    %v1243 = vtanh.pop %v1242
    %v1244 = vsub.f32 1.0, %v1223
    %1246 = vrot.lane.b32.xlu0 %v1243, 96
    %v1247 = vpop.permute.xlu0 %1246
    %v1249 = vmul.f32 %v1244, %v1247
    %v1250 = vmul.f32 %v1223, 0.0
    %v1251 = vadd.f32 %v1249, %v1250
    %1253 = vrot.lane.b32.xlu0 %v1251, 96
    %v1254 = vpop.permute.xlu0 %1253
    %v1255 = vsel %vm150, %v1254, 0
    %1257 = vmatprep.subr.mxu0 0.0
    %1258 = vmatpush1.msra.mxu0 0.0
    %1259 = vmatprep.subr.mxu0 0.0
    %1260 = vmatpush1.msra.mxu0 0.0
    %1261 = vmatprep.subr.mxu0 0.0
    %1262 = vmatpush1.msra.mxu0 0.0
    %1263 = vmatprep.subr.mxu0 0.0
    %1264 = vmatpush1.msra.mxu0 0.0
    %1265 = vmatprep.subr.mxu0 0.0
    %1266 = vmatpush1.msra.mxu0 0.0
    %1267 = vmatprep.subr.mxu0 0.0
    %1268 = vmatpush1.msra.mxu0 0.0
    %1269 = vmatprep.subr.mxu0 0.0
    %1270 = vmatpush1.msra.mxu0 0.0
    %1271 = vmatprep.subr.mxu0 0.0
    %1272 = vmatpush1.msra.mxu0 0.0
    %1273 = vmatprep.subr.mxu0 0.0
    %1274 = vmatpush1.msra.mxu0 0.0
    %1275 = vmatprep.subr.mxu0 0.0
    %1276 = vmatpush1.msra.mxu0 0.0
    %1277 = vmatprep.subr.mxu0 0.0
    %1278 = vmatpush1.msra.mxu0 0.0
    %1279 = vmatprep.subr.mxu0 0.0
    %1280 = vmatpush1.msra.mxu0 0.0
    %1281 = vmatprep.subr.mxu0 0.0
    %1282 = vmatpush1.msra.mxu0 %v1057
    %1283 = vmatprep.subr.mxu0 0.0
    %1284 = vmatpush1.msra.mxu0 %v1056
    %1285 = vmatprep.subr.mxu0 0.0
    %1286 = vmatpush1.msra.mxu0 %v1055
    %1287 = vmatprep.subr.mxu0 0.0
    %1288 = vmatpush1.msra.mxu0 %v1054
    %1289 = vmatprep.subr.mxu0 0.0
    %1290 = vmatpush2.msra.mxu0 0.0
    %1291 = vmatprep.subr.mxu0 0.0
    %1292 = vmatpush2.msra.mxu0 0.0
    %1293 = vmatprep.subr.mxu0 0.0
    %1294 = vmatpush2.msra.mxu0 0.0
    %1295 = vmatprep.subr.mxu0 0.0
    %1296 = vmatpush2.msra.mxu0 0.0
    %1297 = vmatprep.subr.mxu0 0.0
    %1298 = vmatpush2.msra.mxu0 0.0
    %1299 = vmatprep.subr.mxu0 0.0
    %1300 = vmatpush2.msra.mxu0 0.0
    %1301 = vmatprep.subr.mxu0 0.0
    %1302 = vmatpush2.msra.mxu0 0.0
    %1303 = vmatprep.subr.mxu0 0.0
    %1304 = vmatpush2.msra.mxu0 0.0
    %1305 = vmatprep.subr.mxu0 0.0
    %1306 = vmatpush2.msra.mxu0 0.0
    %1307 = vmatprep.subr.mxu0 0.0
    %1308 = vmatpush2.msra.mxu0 0.0
    %1309 = vmatprep.subr.mxu0 0.0
    %1310 = vmatpush2.msra.mxu0 0.0
    %1311 = vmatprep.subr.mxu0 0.0
    %1312 = vmatpush2.msra.mxu0 0.0
    %1313 = vmatprep.subr.mxu0 0.0
    %1314 = vmatpush2.msra.mxu0 0.0
    %1315 = vmatprep.subr.mxu0 0.0
    %1316 = vmatpush2.msra.mxu0 0.0
    %1317 = vmatprep.subr.mxu0 0.0
    %1318 = vmatpush2.msra.mxu0 0.0
    %1319 = vmatprep.subr.mxu0 0.0
    %1320 = vmatpush2.msra.mxu0 0.0
    %1321 = vmatprep.mubr.f32.mxu0 0.0
    %1322 = vmatmul.mubr.f32.gmra.mxu0 %v1255
    %v1323 = vpop.f32.mrf.mxu0
    %v1324 = vadd.f32 0.0, %v1323
    %v1325 = vpop.f32.mrf.mxu0
    %1326 = vdwg.mxu0
    %v1328 = vrot.slane %v1324, 6
    %v1330 = vadd.f32 %v1139, %v1328
    %v1331 = vxor.u32 %v1330, 2147483648
    %v1332 = vmul.f32 %v1331, 1.442695
    %v1333 = vpow.pop %v1332
    %v1334 = vadd.f32 %v1333, 1.0
    %v1335 = vrcp.pop %v1334
    %v1336 = vmul.f32 1.0, %v1335
    %v1337 = vadd.f32 %v1324, %v1230
    %v1339 = vrot.slane %v1337, 6
    %1340 = vrot.lane.b32.xlu0 %v1339, 64
    %v1341 = vpop.permute.xlu0 %1340
    %v1343 = vmul.f32 %v1336, %v1341
    %1345 = vrot.lane.b32.xlu0 %v1343, 64
    %v1346 = vpop.permute.xlu0 %1345
    %v1348 = vadd.f32 %v1139, %v1346
    %v1349 = vtanh.pop %v1348
    %v1350 = vsub.f32 1.0, %v1336
    %1352 = vrot.lane.b32.xlu0 %v1349, 96
    %v1353 = vpop.permute.xlu0 %1352
    %v1355 = vmul.f32 %v1350, %v1353
    %v1356 = vrot.slane %v1251, 6
    %v1358 = vmul.f32 %v1336, %v1356
    %v1359 = vadd.f32 %v1355, %v1358
    %v1361 = vrot.slane %v1359, 2
    %1362 = vrot.lane.b32.xlu0 %v1361, 96
    %v1363 = vpop.permute.xlu0 %1362
    %v1364 = vsel %vm150, %v1363, 0
    %1366 = vmatprep.subr.mxu0 0.0
    %1367 = vmatpush1.msra.mxu0 0.0
    %1368 = vmatprep.subr.mxu0 0.0
    %1369 = vmatpush1.msra.mxu0 0.0
    %1370 = vmatprep.subr.mxu0 0.0
    %1371 = vmatpush1.msra.mxu0 0.0
    %1372 = vmatprep.subr.mxu0 0.0
    %1373 = vmatpush1.msra.mxu0 0.0
    %1374 = vmatprep.subr.mxu0 0.0
    %1375 = vmatpush1.msra.mxu0 0.0
    %1376 = vmatprep.subr.mxu0 0.0
    %1377 = vmatpush1.msra.mxu0 0.0
    %1378 = vmatprep.subr.mxu0 0.0
    %1379 = vmatpush1.msra.mxu0 0.0
    %1380 = vmatprep.subr.mxu0 0.0
    %1381 = vmatpush1.msra.mxu0 0.0
    %1382 = vmatprep.subr.mxu0 0.0
    %1383 = vmatpush1.msra.mxu0 0.0
    %1384 = vmatprep.subr.mxu0 0.0
    %1385 = vmatpush1.msra.mxu0 0.0
    %1386 = vmatprep.subr.mxu0 0.0
    %1387 = vmatpush1.msra.mxu0 0.0
    %1388 = vmatprep.subr.mxu0 0.0
    %1389 = vmatpush1.msra.mxu0 0.0
    %1390 = vmatprep.subr.mxu0 0.0
    %1391 = vmatpush1.msra.mxu0 %v1057
    %1392 = vmatprep.subr.mxu0 0.0
    %1393 = vmatpush1.msra.mxu0 %v1056
    %1394 = vmatprep.subr.mxu0 0.0
    %1395 = vmatpush1.msra.mxu0 %v1055
    %1396 = vmatprep.subr.mxu0 0.0
    %1397 = vmatpush1.msra.mxu0 %v1054
    %1398 = vmatprep.subr.mxu0 0.0
    %1399 = vmatpush2.msra.mxu0 0.0
    %1400 = vmatprep.subr.mxu0 0.0
    %1401 = vmatpush2.msra.mxu0 0.0
    %1402 = vmatprep.subr.mxu0 0.0
    %1403 = vmatpush2.msra.mxu0 0.0
    %1404 = vmatprep.subr.mxu0 0.0
    %1405 = vmatpush2.msra.mxu0 0.0
    %1406 = vmatprep.subr.mxu0 0.0
    %1407 = vmatpush2.msra.mxu0 0.0
    %1408 = vmatprep.subr.mxu0 0.0
    %1409 = vmatpush2.msra.mxu0 0.0
    %1410 = vmatprep.subr.mxu0 0.0
    %1411 = vmatpush2.msra.mxu0 0.0
    %1412 = vmatprep.subr.mxu0 0.0
    %1413 = vmatpush2.msra.mxu0 0.0
    %1414 = vmatprep.subr.mxu0 0.0
    %1415 = vmatpush2.msra.mxu0 0.0
    %1416 = vmatprep.subr.mxu0 0.0
    %1417 = vmatpush2.msra.mxu0 0.0
    %1418 = vmatprep.subr.mxu0 0.0
    %1419 = vmatpush2.msra.mxu0 0.0
    %1420 = vmatprep.subr.mxu0 0.0
    %1421 = vmatpush2.msra.mxu0 0.0
    %1422 = vmatprep.subr.mxu0 0.0
    %1423 = vmatpush2.msra.mxu0 0.0
    %1424 = vmatprep.subr.mxu0 0.0
    %1425 = vmatpush2.msra.mxu0 0.0
    %1426 = vmatprep.subr.mxu0 0.0
    %1427 = vmatpush2.msra.mxu0 0.0
    %1428 = vmatprep.subr.mxu0 0.0
    %1429 = vmatpush2.msra.mxu0 0.0
    %1430 = vmatprep.mubr.f32.mxu0 0.0
    %1431 = vmatmul.mubr.f32.gmra.mxu0 %v1364
    %v1432 = vpop.f32.mrf.mxu0
    %v1433 = vadd.f32 0.0, %v1432
    %v1434 = vpop.f32.mrf.mxu0
    %1435 = vdwg.mxu0
    %v1437 = vrot.slane %v1433, 4
    %v1439 = vadd.f32 %v1139, %v1437
    %v1440 = vxor.u32 %v1439, 2147483648
    %v1441 = vmul.f32 %v1440, 1.442695
    %v1442 = vpow.pop %v1441
    %v1443 = vadd.f32 %v1442, 1.0
    %v1444 = vrcp.pop %v1443
    %v1445 = vmul.f32 1.0, %v1444
    %v1446 = vadd.f32 %v1433, %v1230
    %v1448 = vrot.slane %v1446, 4
    %1449 = vrot.lane.b32.xlu0 %v1448, 64
    %v1450 = vpop.permute.xlu0 %1449
    %v1452 = vmul.f32 %v1445, %v1450
    %1454 = vrot.lane.b32.xlu0 %v1452, 64
    %v1455 = vpop.permute.xlu0 %1454
    %v1457 = vadd.f32 %v1139, %v1455
    %v1458 = vtanh.pop %v1457
    %v1459 = vsub.f32 1.0, %v1445
    %1461 = vrot.lane.b32.xlu0 %v1458, 96
    %v1462 = vpop.permute.xlu0 %1461
    %v1464 = vmul.f32 %v1459, %v1462
    %v1465 = vrot.slane %v1359, 6
    %v1467 = vmul.f32 %v1445, %v1465
    %v1468 = vadd.f32 %v1464, %v1467
    %v1470 = vrot.slane %v1468, 4
    %1471 = vrot.lane.b32.xlu0 %v1470, 96
    %v1472 = vpop.permute.xlu0 %1471
    %v1473 = vsel %vm150, %v1472, 0
    %1475 = vmatprep.subr.mxu0 0.0
    %1476 = vmatpush1.msra.mxu0 0.0
    %1477 = vmatprep.subr.mxu0 0.0
    %1478 = vmatpush1.msra.mxu0 0.0
    %1479 = vmatprep.subr.mxu0 0.0
    %1480 = vmatpush1.msra.mxu0 0.0
    %1481 = vmatprep.subr.mxu0 0.0
    %1482 = vmatpush1.msra.mxu0 0.0
    %1483 = vmatprep.subr.mxu0 0.0
    %1484 = vmatpush1.msra.mxu0 0.0
    %1485 = vmatprep.subr.mxu0 0.0
    %1486 = vmatpush1.msra.mxu0 0.0
    %1487 = vmatprep.subr.mxu0 0.0
    %1488 = vmatpush1.msra.mxu0 0.0
    %1489 = vmatprep.subr.mxu0 0.0
    %1490 = vmatpush1.msra.mxu0 0.0
    %1491 = vmatprep.subr.mxu0 0.0
    %1492 = vmatpush1.msra.mxu0 0.0
    %1493 = vmatprep.subr.mxu0 0.0
    %1494 = vmatpush1.msra.mxu0 0.0
    %1495 = vmatprep.subr.mxu0 0.0
    %1496 = vmatpush1.msra.mxu0 0.0
    %1497 = vmatprep.subr.mxu0 0.0
    %1498 = vmatpush1.msra.mxu0 0.0
    %1499 = vmatprep.subr.mxu0 0.0
    %1500 = vmatpush1.msra.mxu0 %v1057
    %1501 = vmatprep.subr.mxu0 0.0
    %1502 = vmatpush1.msra.mxu0 %v1056
    %1503 = vmatprep.subr.mxu0 0.0
    %1504 = vmatpush1.msra.mxu0 %v1055
    %1505 = vmatprep.subr.mxu0 0.0
    %1506 = vmatpush1.msra.mxu0 %v1054
    %1507 = vmatprep.subr.mxu0 0.0
    %1508 = vmatpush2.msra.mxu0 0.0
    %1509 = vmatprep.subr.mxu0 0.0
    %1510 = vmatpush2.msra.mxu0 0.0
    %1511 = vmatprep.subr.mxu0 0.0
    %1512 = vmatpush2.msra.mxu0 0.0
    %1513 = vmatprep.subr.mxu0 0.0
    %1514 = vmatpush2.msra.mxu0 0.0
    %1515 = vmatprep.subr.mxu0 0.0
    %1516 = vmatpush2.msra.mxu0 0.0
    %1517 = vmatprep.subr.mxu0 0.0
    %1518 = vmatpush2.msra.mxu0 0.0
    %1519 = vmatprep.subr.mxu0 0.0
    %1520 = vmatpush2.msra.mxu0 0.0
    %1521 = vmatprep.subr.mxu0 0.0
    %1522 = vmatpush2.msra.mxu0 0.0
    %1523 = vmatprep.subr.mxu0 0.0
    %1524 = vmatpush2.msra.mxu0 0.0
    %1525 = vmatprep.subr.mxu0 0.0
    %1526 = vmatpush2.msra.mxu0 0.0
    %1527 = vmatprep.subr.mxu0 0.0
    %1528 = vmatpush2.msra.mxu0 0.0
    %1529 = vmatprep.subr.mxu0 0.0
    %1530 = vmatpush2.msra.mxu0 0.0
    %1531 = vmatprep.subr.mxu0 0.0
    %1532 = vmatpush2.msra.mxu0 0.0
    %1533 = vmatprep.subr.mxu0 0.0
    %1534 = vmatpush2.msra.mxu0 0.0
    %1535 = vmatprep.subr.mxu0 0.0
    %1536 = vmatpush2.msra.mxu0 0.0
    %1537 = vmatprep.subr.mxu0 0.0
    %1538 = vmatpush2.msra.mxu0 0.0
    %1539 = vmatprep.mubr.f32.mxu0 0.0
    %1540 = vmatmul.mubr.f32.gmra.mxu0 %v1473
    %v1541 = vpop.f32.mrf.mxu0
    %v1542 = vadd.f32 0.0, %v1541
    %v1543 = vpop.f32.mrf.mxu0
    %1544 = vdwg.mxu0
    %v1546 = vrot.slane %v1542, 2
    %v1548 = vadd.f32 %v1139, %v1546
    %v1549 = vxor.u32 %v1548, 2147483648
    %v1550 = vmul.f32 %v1549, 1.442695
    %v1551 = vpow.pop %v1550
    %v1552 = vadd.f32 %v1551, 1.0
    %v1553 = vrcp.pop %v1552
    %v1554 = vmul.f32 1.0, %v1553
    %v1555 = vadd.f32 %v1542, %v1230
    %v1557 = vrot.slane %v1555, 2
    %1558 = vrot.lane.b32.xlu0 %v1557, 64
    %v1559 = vpop.permute.xlu0 %1558
    %v1561 = vmul.f32 %v1554, %v1559
    %1563 = vrot.lane.b32.xlu0 %v1561, 64
    %v1564 = vpop.permute.xlu0 %1563
    %v1566 = vadd.f32 %v1139, %v1564
    %v1567 = vtanh.pop %v1566
    %v1568 = vsub.f32 1.0, %v1554
    %1570 = vrot.lane.b32.xlu0 %v1567, 96
    %v1571 = vpop.permute.xlu0 %1570
    %v1573 = vmul.f32 %v1568, %v1571
    %v1574 = vrot.slane %v1468, 6
    %v1576 = vmul.f32 %v1554, %v1574
    %v1577 = vadd.f32 %v1573, %v1576
    %v1579 = vrot.slane %v1577, 6
    %1580 = vrot.lane.b32.xlu0 %v1579, 96
    %v1581 = vpop.permute.xlu0 %1580
    %v1582 = vsel %vm150, %v1581, 0
    %1584 = vmatprep.subr.mxu0 0.0
    %1585 = vmatpush1.msra.mxu0 0.0
    %1586 = vmatprep.subr.mxu0 0.0
    %1587 = vmatpush1.msra.mxu0 0.0
    %1588 = vmatprep.subr.mxu0 0.0
    %1589 = vmatpush1.msra.mxu0 0.0
    %1590 = vmatprep.subr.mxu0 0.0
    %1591 = vmatpush1.msra.mxu0 0.0
    %1592 = vmatprep.subr.mxu0 0.0
    %1593 = vmatpush1.msra.mxu0 0.0
    %1594 = vmatprep.subr.mxu0 0.0
    %1595 = vmatpush1.msra.mxu0 0.0
    %1596 = vmatprep.subr.mxu0 0.0
    %1597 = vmatpush1.msra.mxu0 0.0
    %1598 = vmatprep.subr.mxu0 0.0
    %1599 = vmatpush1.msra.mxu0 0.0
    %1600 = vmatprep.subr.mxu0 0.0
    %1601 = vmatpush1.msra.mxu0 0.0
    %1602 = vmatprep.subr.mxu0 0.0
    %1603 = vmatpush1.msra.mxu0 0.0
    %1604 = vmatprep.subr.mxu0 0.0
    %1605 = vmatpush1.msra.mxu0 0.0
    %1606 = vmatprep.subr.mxu0 0.0
    %1607 = vmatpush1.msra.mxu0 0.0
    %1608 = vmatprep.subr.mxu0 0.0
    %1609 = vmatpush1.msra.mxu0 %v1057
    %1610 = vmatprep.subr.mxu0 0.0
    %1611 = vmatpush1.msra.mxu0 %v1056
    %1612 = vmatprep.subr.mxu0 0.0
    %1613 = vmatpush1.msra.mxu0 %v1055
    %1614 = vmatprep.subr.mxu0 0.0
    %1615 = vmatpush1.msra.mxu0 %v1054
    %1616 = vmatprep.subr.mxu0 0.0
    %1617 = vmatpush2.msra.mxu0 0.0
    %1618 = vmatprep.subr.mxu0 0.0
    %1619 = vmatpush2.msra.mxu0 0.0
    %1620 = vmatprep.subr.mxu0 0.0
    %1621 = vmatpush2.msra.mxu0 0.0
    %1622 = vmatprep.subr.mxu0 0.0
    %1623 = vmatpush2.msra.mxu0 0.0
    %1624 = vmatprep.subr.mxu0 0.0
    %1625 = vmatpush2.msra.mxu0 0.0
    %1626 = vmatprep.subr.mxu0 0.0
    %1627 = vmatpush2.msra.mxu0 0.0
    %1628 = vmatprep.subr.mxu0 0.0
    %1629 = vmatpush2.msra.mxu0 0.0
    %1630 = vmatprep.subr.mxu0 0.0
    %1631 = vmatpush2.msra.mxu0 0.0
    %1632 = vmatprep.subr.mxu0 0.0
    %1633 = vmatpush2.msra.mxu0 0.0
    %1634 = vmatprep.subr.mxu0 0.0
    %1635 = vmatpush2.msra.mxu0 0.0
    %1636 = vmatprep.subr.mxu0 0.0
    %1637 = vmatpush2.msra.mxu0 0.0
    %1638 = vmatprep.subr.mxu0 0.0
    %1639 = vmatpush2.msra.mxu0 0.0
    %1640 = vmatprep.subr.mxu0 0.0
    %1641 = vmatpush2.msra.mxu0 0.0
    %1642 = vmatprep.subr.mxu0 0.0
    %1643 = vmatpush2.msra.mxu0 0.0
    %1644 = vmatprep.subr.mxu0 0.0
    %1645 = vmatpush2.msra.mxu0 0.0
    %1646 = vmatprep.subr.mxu0 0.0
    %1647 = vmatpush2.msra.mxu0 0.0
    %1648 = vmatprep.mubr.f32.mxu0 0.0
    %1649 = vmatmul.mubr.f32.gmra.mxu0 %v1582
    %v1650 = vpop.f32.mrf.mxu0
    %v1651 = vadd.f32 0.0, %v1650
    %v1652 = vpop.f32.mrf.mxu0
    %1653 = vdwg.mxu0
    %v1654 = vadd.f32 %v1144, %v1651
    %v1655 = vxor.u32 %v1654, 2147483648
    %v1656 = vmul.f32 %v1655, 1.442695
    %v1657 = vpow.pop %v1656
    %v1658 = vadd.f32 %v1657, 1.0
    %v1659 = vrcp.pop %v1658
    %v1660 = vmul.f32 1.0, %v1659
    %v1661 = vadd.f32 %v1651, %v1230
    %1663 = vrot.lane.b32.xlu0 %v1661, 64
    %v1664 = vpop.permute.xlu0 %1663
    %v1666 = vmul.f32 %v1660, %v1664
    %1668 = vrot.lane.b32.xlu0 %v1666, 64
    %v1669 = vpop.permute.xlu0 %1668
    %v1671 = vadd.f32 %v1144, %v1669
    %v1672 = vtanh.pop %v1671
    %v1673 = vsub.f32 1.0, %v1660
    %1675 = vrot.lane.b32.xlu0 %v1672, 96
    %v1676 = vpop.permute.xlu0 %1675
    %v1678 = vmul.f32 %v1673, %v1676
    %v1680 = vmul.f32 %v1660, %v1579
    %v1681 = vadd.f32 %v1678, %v1680
    %1683 = vrot.lane.b32.xlu0 %v1681, 96
    %v1684 = vpop.permute.xlu0 %1683
    %v1685 = vsel %vm150, %v1684, 0
    %1687 = vmatprep.subr.mxu0 0.0
    %1688 = vmatpush1.msra.mxu0 0.0
    %1689 = vmatprep.subr.mxu0 0.0
    %1690 = vmatpush1.msra.mxu0 0.0
    %1691 = vmatprep.subr.mxu0 0.0
    %1692 = vmatpush1.msra.mxu0 0.0
    %1693 = vmatprep.subr.mxu0 0.0
    %1694 = vmatpush1.msra.mxu0 0.0
    %1695 = vmatprep.subr.mxu0 0.0
    %1696 = vmatpush1.msra.mxu0 0.0
    %1697 = vmatprep.subr.mxu0 0.0
    %1698 = vmatpush1.msra.mxu0 0.0
    %1699 = vmatprep.subr.mxu0 0.0
    %1700 = vmatpush1.msra.mxu0 0.0
    %1701 = vmatprep.subr.mxu0 0.0
    %1702 = vmatpush1.msra.mxu0 0.0
    %1703 = vmatprep.subr.mxu0 0.0
    %1704 = vmatpush1.msra.mxu0 0.0
    %1705 = vmatprep.subr.mxu0 0.0
    %1706 = vmatpush1.msra.mxu0 0.0
    %1707 = vmatprep.subr.mxu0 0.0
    %1708 = vmatpush1.msra.mxu0 0.0
    %1709 = vmatprep.subr.mxu0 0.0
    %1710 = vmatpush1.msra.mxu0 0.0
    %1711 = vmatprep.subr.mxu0 0.0
    %1712 = vmatpush1.msra.mxu0 %v1057
    %1713 = vmatprep.subr.mxu0 0.0
    %1714 = vmatpush1.msra.mxu0 %v1056
    %1715 = vmatprep.subr.mxu0 0.0
    %1716 = vmatpush1.msra.mxu0 %v1055
    %1717 = vmatprep.subr.mxu0 0.0
    %1718 = vmatpush1.msra.mxu0 %v1054
    %1719 = vmatprep.subr.mxu0 0.0
    %1720 = vmatpush2.msra.mxu0 0.0
    %1721 = vmatprep.subr.mxu0 0.0
    %1722 = vmatpush2.msra.mxu0 0.0
    %1723 = vmatprep.subr.mxu0 0.0
    %1724 = vmatpush2.msra.mxu0 0.0
    %1725 = vmatprep.subr.mxu0 0.0
    %1726 = vmatpush2.msra.mxu0 0.0
    %1727 = vmatprep.subr.mxu0 0.0
    %1728 = vmatpush2.msra.mxu0 0.0
    %1729 = vmatprep.subr.mxu0 0.0
    %1730 = vmatpush2.msra.mxu0 0.0
    %1731 = vmatprep.subr.mxu0 0.0
    %1732 = vmatpush2.msra.mxu0 0.0
    %1733 = vmatprep.subr.mxu0 0.0
    %1734 = vmatpush2.msra.mxu0 0.0
    %1735 = vmatprep.subr.mxu0 0.0
    %1736 = vmatpush2.msra.mxu0 0.0
    %1737 = vmatprep.subr.mxu0 0.0
    %1738 = vmatpush2.msra.mxu0 0.0
    %1739 = vmatprep.subr.mxu0 0.0
    %1740 = vmatpush2.msra.mxu0 0.0
    %1741 = vmatprep.subr.mxu0 0.0
    %1742 = vmatpush2.msra.mxu0 0.0
    %1743 = vmatprep.subr.mxu0 0.0
    %1744 = vmatpush2.msra.mxu0 0.0
    %1745 = vmatprep.subr.mxu0 0.0
    %1746 = vmatpush2.msra.mxu0 0.0
    %1747 = vmatprep.subr.mxu0 0.0
    %1748 = vmatpush2.msra.mxu0 0.0
    %1749 = vmatprep.subr.mxu0 0.0
    %1750 = vmatpush2.msra.mxu0 0.0
    %1751 = vmatprep.mubr.f32.mxu0 0.0
    %1752 = vmatmul.mubr.f32.gmra.mxu0 %v1685
    %v1753 = vpop.f32.mrf.mxu0
    %v1754 = vadd.f32 0.0, %v1753
    %v1755 = vpop.f32.mrf.mxu0
    %1756 = vdwg.mxu0
    %v1758 = vrot.slane %v1754, 6
    %v1760 = vadd.f32 %v1144, %v1758
    %v1761 = vxor.u32 %v1760, 2147483648
    %v1762 = vmul.f32 %v1761, 1.442695
    %v1763 = vpow.pop %v1762
    %v1764 = vadd.f32 %v1763, 1.0
    %v1765 = vrcp.pop %v1764
    %v1766 = vmul.f32 1.0, %v1765
    %v1767 = vadd.f32 %v1754, %v1230
    %v1769 = vrot.slane %v1767, 6
    %1770 = vrot.lane.b32.xlu0 %v1769, 64
    %v1771 = vpop.permute.xlu0 %1770
    %v1773 = vmul.f32 %v1766, %v1771
    %1775 = vrot.lane.b32.xlu0 %v1773, 64
    %v1776 = vpop.permute.xlu0 %1775
    %v1778 = vadd.f32 %v1144, %v1776
    %v1779 = vtanh.pop %v1778
    %v1780 = vsub.f32 1.0, %v1766
    %1782 = vrot.lane.b32.xlu0 %v1779, 96
    %v1783 = vpop.permute.xlu0 %1782
    %v1785 = vmul.f32 %v1780, %v1783
    %v1786 = vrot.slane %v1681, 6
    %v1788 = vmul.f32 %v1766, %v1786
    %v1789 = vadd.f32 %v1785, %v1788
    %v1791 = vrot.slane %v1789, 2
    %1792 = vrot.lane.b32.xlu0 %v1791, 96
    %v1793 = vpop.permute.xlu0 %1792
    %v1794 = vsel %vm150, %v1793, 0
    %1796 = vmatprep.subr.mxu0 0.0
    %1797 = vmatpush1.msra.mxu0 0.0
    %1798 = vmatprep.subr.mxu0 0.0
    %1799 = vmatpush1.msra.mxu0 0.0
    %1800 = vmatprep.subr.mxu0 0.0
    %1801 = vmatpush1.msra.mxu0 0.0
    %1802 = vmatprep.subr.mxu0 0.0
    %1803 = vmatpush1.msra.mxu0 0.0
    %1804 = vmatprep.subr.mxu0 0.0
    %1805 = vmatpush1.msra.mxu0 0.0
    %1806 = vmatprep.subr.mxu0 0.0
    %1807 = vmatpush1.msra.mxu0 0.0
    %1808 = vmatprep.subr.mxu0 0.0
    %1809 = vmatpush1.msra.mxu0 0.0
    %1810 = vmatprep.subr.mxu0 0.0
    %1811 = vmatpush1.msra.mxu0 0.0
    %1812 = vmatprep.subr.mxu0 0.0
    %1813 = vmatpush1.msra.mxu0 0.0
    %1814 = vmatprep.subr.mxu0 0.0
    %1815 = vmatpush1.msra.mxu0 0.0
    %1816 = vmatprep.subr.mxu0 0.0
    %1817 = vmatpush1.msra.mxu0 0.0
    %1818 = vmatprep.subr.mxu0 0.0
    %1819 = vmatpush1.msra.mxu0 0.0
    %1820 = vmatprep.subr.mxu0 0.0
    %1821 = vmatpush1.msra.mxu0 %v1057
    %1822 = vmatprep.subr.mxu0 0.0
    %1823 = vmatpush1.msra.mxu0 %v1056
    %1824 = vmatprep.subr.mxu0 0.0
    %1825 = vmatpush1.msra.mxu0 %v1055
    %1826 = vmatprep.subr.mxu0 0.0
    %1827 = vmatpush1.msra.mxu0 %v1054
    %1828 = vmatprep.subr.mxu0 0.0
    %1829 = vmatpush2.msra.mxu0 0.0
    %1830 = vmatprep.subr.mxu0 0.0
    %1831 = vmatpush2.msra.mxu0 0.0
    %1832 = vmatprep.subr.mxu0 0.0
    %1833 = vmatpush2.msra.mxu0 0.0
    %1834 = vmatprep.subr.mxu0 0.0
    %1835 = vmatpush2.msra.mxu0 0.0
    %1836 = vmatprep.subr.mxu0 0.0
    %1837 = vmatpush2.msra.mxu0 0.0
    %1838 = vmatprep.subr.mxu0 0.0
    %1839 = vmatpush2.msra.mxu0 0.0
    %1840 = vmatprep.subr.mxu0 0.0
    %1841 = vmatpush2.msra.mxu0 0.0
    %1842 = vmatprep.subr.mxu0 0.0
    %1843 = vmatpush2.msra.mxu0 0.0
    %1844 = vmatprep.subr.mxu0 0.0
    %1845 = vmatpush2.msra.mxu0 0.0
    %1846 = vmatprep.subr.mxu0 0.0
    %1847 = vmatpush2.msra.mxu0 0.0
    %1848 = vmatprep.subr.mxu0 0.0
    %1849 = vmatpush2.msra.mxu0 0.0
    %1850 = vmatprep.subr.mxu0 0.0
    %1851 = vmatpush2.msra.mxu0 0.0
    %1852 = vmatprep.subr.mxu0 0.0
    %1853 = vmatpush2.msra.mxu0 0.0
    %1854 = vmatprep.subr.mxu0 0.0
    %1855 = vmatpush2.msra.mxu0 0.0
    %1856 = vmatprep.subr.mxu0 0.0
    %1857 = vmatpush2.msra.mxu0 0.0
    %1858 = vmatprep.subr.mxu0 0.0
    %1859 = vmatpush2.msra.mxu0 0.0
    %1860 = vmatprep.mubr.f32.mxu0 0.0
    %1861 = vmatmul.mubr.f32.gmra.mxu0 %v1794
    %v1862 = vpop.f32.mrf.mxu0
    %v1863 = vadd.f32 0.0, %v1862
    %v1864 = vpop.f32.mrf.mxu0
    %1865 = vdwg.mxu0
    %v1867 = vrot.slane %v1863, 4
    %v1869 = vadd.f32 %v1144, %v1867
    %v1870 = vxor.u32 %v1869, 2147483648
    %v1871 = vmul.f32 %v1870, 1.442695
    %v1872 = vpow.pop %v1871
    %v1873 = vadd.f32 %v1872, 1.0
    %v1874 = vrcp.pop %v1873
    %v1875 = vmul.f32 1.0, %v1874
    %v1876 = vadd.f32 %v1863, %v1230
    %v1878 = vrot.slane %v1876, 4
    %1879 = vrot.lane.b32.xlu0 %v1878, 64
    %v1880 = vpop.permute.xlu0 %1879
    %v1882 = vmul.f32 %v1875, %v1880
    %1884 = vrot.lane.b32.xlu0 %v1882, 64
    %v1885 = vpop.permute.xlu0 %1884
    %v1887 = vadd.f32 %v1144, %v1885
    %v1888 = vtanh.pop %v1887
    %v1889 = vsub.f32 1.0, %v1875
    %1891 = vrot.lane.b32.xlu0 %v1888, 96
    %v1892 = vpop.permute.xlu0 %1891
    %v1894 = vmul.f32 %v1889, %v1892
    %v1895 = vrot.slane %v1789, 6
    %v1897 = vmul.f32 %v1875, %v1895
    %v1898 = vadd.f32 %v1894, %v1897
    %v1900 = vrot.slane %v1898, 4
    %1901 = vrot.lane.b32.xlu0 %v1900, 96
    %v1902 = vpop.permute.xlu0 %1901
    %v1903 = vsel %vm150, %v1902, 0
    %1905 = vmatprep.subr.mxu0 0.0
    %1906 = vmatpush1.msra.mxu0 0.0
    %1907 = vmatprep.subr.mxu0 0.0
    %1908 = vmatpush1.msra.mxu0 0.0
    %1909 = vmatprep.subr.mxu0 0.0
    %1910 = vmatpush1.msra.mxu0 0.0
    %1911 = vmatprep.subr.mxu0 0.0
    %1912 = vmatpush1.msra.mxu0 0.0
    %1913 = vmatprep.subr.mxu0 0.0
    %1914 = vmatpush1.msra.mxu0 0.0
    %1915 = vmatprep.subr.mxu0 0.0
    %1916 = vmatpush1.msra.mxu0 0.0
    %1917 = vmatprep.subr.mxu0 0.0
    %1918 = vmatpush1.msra.mxu0 0.0
    %1919 = vmatprep.subr.mxu0 0.0
    %1920 = vmatpush1.msra.mxu0 0.0
    %1921 = vmatprep.subr.mxu0 0.0
    %1922 = vmatpush1.msra.mxu0 0.0
    %1923 = vmatprep.subr.mxu0 0.0
    %1924 = vmatpush1.msra.mxu0 0.0
    %1925 = vmatprep.subr.mxu0 0.0
    %1926 = vmatpush1.msra.mxu0 0.0
    %1927 = vmatprep.subr.mxu0 0.0
    %1928 = vmatpush1.msra.mxu0 0.0
    %1929 = vmatprep.subr.mxu0 0.0
    %1930 = vmatpush1.msra.mxu0 %v1057
    %1931 = vmatprep.subr.mxu0 0.0
    %1932 = vmatpush1.msra.mxu0 %v1056
    %1933 = vmatprep.subr.mxu0 0.0
    %1934 = vmatpush1.msra.mxu0 %v1055
    %1935 = vmatprep.subr.mxu0 0.0
    %1936 = vmatpush1.msra.mxu0 %v1054
    %1937 = vmatprep.subr.mxu0 0.0
    %1938 = vmatpush2.msra.mxu0 0.0
    %1939 = vmatprep.subr.mxu0 0.0
    %1940 = vmatpush2.msra.mxu0 0.0
    %1941 = vmatprep.subr.mxu0 0.0
    %1942 = vmatpush2.msra.mxu0 0.0
    %1943 = vmatprep.subr.mxu0 0.0
    %1944 = vmatpush2.msra.mxu0 0.0
    %1945 = vmatprep.subr.mxu0 0.0
    %1946 = vmatpush2.msra.mxu0 0.0
    %1947 = vmatprep.subr.mxu0 0.0
    %1948 = vmatpush2.msra.mxu0 0.0
    %1949 = vmatprep.subr.mxu0 0.0
    %1950 = vmatpush2.msra.mxu0 0.0
    %1951 = vmatprep.subr.mxu0 0.0
    %1952 = vmatpush2.msra.mxu0 0.0
    %1953 = vmatprep.subr.mxu0 0.0
    %1954 = vmatpush2.msra.mxu0 0.0
    %1955 = vmatprep.subr.mxu0 0.0
    %1956 = vmatpush2.msra.mxu0 0.0
    %1957 = vmatprep.subr.mxu0 0.0
    %1958 = vmatpush2.msra.mxu0 0.0
    %1959 = vmatprep.subr.mxu0 0.0
    %1960 = vmatpush2.msra.mxu0 0.0
    %1961 = vmatprep.subr.mxu0 0.0
    %1962 = vmatpush2.msra.mxu0 0.0
    %1963 = vmatprep.subr.mxu0 0.0
    %1964 = vmatpush2.msra.mxu0 0.0
    %1965 = vmatprep.subr.mxu0 0.0
    %1966 = vmatpush2.msra.mxu0 0.0
    %1967 = vmatprep.subr.mxu0 0.0
    %1968 = vmatpush2.msra.mxu0 0.0
    %1969 = vmatprep.mubr.f32.mxu0 0.0
    %1970 = vmatmul.mubr.f32.gmra.mxu0 %v1903
    %v1971 = vpop.f32.mrf.mxu0
    %v1972 = vadd.f32 0.0, %v1971
    %v1973 = vpop.f32.mrf.mxu0
    %1974 = vdwg.mxu0
    %v1976 = vrot.slane %v1972, 2
    %v1978 = vadd.f32 %v1144, %v1976
    %v1979 = vxor.u32 %v1978, 2147483648
    %v1980 = vmul.f32 %v1979, 1.442695
    %v1981 = vpow.pop %v1980
    %v1982 = vadd.f32 %v1981, 1.0
    %v1983 = vrcp.pop %v1982
    %v1984 = vmul.f32 1.0, %v1983
    %v1985 = vadd.f32 %v1972, %v1230
    %v1987 = vrot.slane %v1985, 2
    %1988 = vrot.lane.b32.xlu0 %v1987, 64
    %v1989 = vpop.permute.xlu0 %1988
    %v1991 = vmul.f32 %v1984, %v1989
    %1993 = vrot.lane.b32.xlu0 %v1991, 64
    %v1994 = vpop.permute.xlu0 %1993
    %v1996 = vadd.f32 %v1144, %v1994
    %v1997 = vtanh.pop %v1996
    %v1998 = vsub.f32 1.0, %v1984
    %2000 = vrot.lane.b32.xlu0 %v1997, 96
    %v2001 = vpop.permute.xlu0 %2000
    %v2003 = vmul.f32 %v1998, %v2001
    %v2004 = vrot.slane %v1898, 6
    %v2006 = vmul.f32 %v1984, %v2004
    %v2007 = vadd.f32 %v2003, %v2006
    %v2008 = vld [vmem:[%s9] sm:$0xff]
    %v2009 = vld [vmem:[%s9 + $0x8] sm:$0xff]
    %v2010 = vld [vmem:[%s9 + $0x10] sm:$0xff]
    %v2011 = vld [vmem:[%s9 + $0x18] sm:$0xff]
    %v2012 = vld [vmem:[%s10] sm:$0x1]
    %v2014 = vlaneseq
    %v2015 = vshrl.u32 %v2014, 7
    %v2016 = vsub.s32 0, %v2015
    %v2017 = vrot.slane %v2012, %v2016
    %v2020 = vrot.slane %v2007, 6
    %2021 = vrot.lane.b32.xlu0 %v2020, 96
    %v2022 = vpop.permute.xlu0 %2021
    %v2023 = vsel %vm150, %v2022, 0
    %2025 = vmatprep.subr.mxu0 0.0
    %2026 = vmatpush1.msra.mxu0 0.0
    %2027 = vmatprep.subr.mxu0 0.0
    %2028 = vmatpush1.msra.mxu0 0.0
    %2029 = vmatprep.subr.mxu0 0.0
    %2030 = vmatpush1.msra.mxu0 0.0
    %2031 = vmatprep.subr.mxu0 0.0
    %2032 = vmatpush1.msra.mxu0 0.0
    %2033 = vmatprep.subr.mxu0 0.0
    %2034 = vmatpush1.msra.mxu0 0.0
    %2035 = vmatprep.subr.mxu0 0.0
    %2036 = vmatpush1.msra.mxu0 0.0
    %2037 = vmatprep.subr.mxu0 0.0
    %2038 = vmatpush1.msra.mxu0 0.0
    %2039 = vmatprep.subr.mxu0 0.0
    %2040 = vmatpush1.msra.mxu0 0.0
    %2041 = vmatprep.subr.mxu0 0.0
    %2042 = vmatpush1.msra.mxu0 0.0
    %2043 = vmatprep.subr.mxu0 0.0
    %2044 = vmatpush1.msra.mxu0 0.0
    %2045 = vmatprep.subr.mxu0 0.0
    %2046 = vmatpush1.msra.mxu0 0.0
    %2047 = vmatprep.subr.mxu0 0.0
    %2048 = vmatpush1.msra.mxu0 0.0
    %2049 = vmatprep.subr.mxu0 0.0
    %2050 = vmatpush1.msra.mxu0 %v2011
    %2051 = vmatprep.subr.mxu0 0.0
    %2052 = vmatpush1.msra.mxu0 %v2010
    %2053 = vmatprep.subr.mxu0 0.0
    %2054 = vmatpush1.msra.mxu0 %v2009
    %2055 = vmatprep.subr.mxu0 0.0
    %2056 = vmatpush1.msra.mxu0 %v2008
    %2057 = vmatprep.subr.mxu0 0.0
    %2058 = vmatpush2.msra.mxu0 0.0
    %2059 = vmatprep.subr.mxu0 0.0
    %2060 = vmatpush2.msra.mxu0 0.0
    %2061 = vmatprep.subr.mxu0 0.0
    %2062 = vmatpush2.msra.mxu0 0.0
    %2063 = vmatprep.subr.mxu0 0.0
    %2064 = vmatpush2.msra.mxu0 0.0
    %2065 = vmatprep.subr.mxu0 0.0
    %2066 = vmatpush2.msra.mxu0 0.0
    %2067 = vmatprep.subr.mxu0 0.0
    %2068 = vmatpush2.msra.mxu0 0.0
    %2069 = vmatprep.subr.mxu0 0.0
    %2070 = vmatpush2.msra.mxu0 0.0
    %2071 = vmatprep.subr.mxu0 0.0
    %2072 = vmatpush2.msra.mxu0 0.0
    %2073 = vmatprep.subr.mxu0 0.0
    %2074 = vmatpush2.msra.mxu0 0.0
    %2075 = vmatprep.subr.mxu0 0.0
    %2076 = vmatpush2.msra.mxu0 0.0
    %2077 = vmatprep.subr.mxu0 0.0
    %2078 = vmatpush2.msra.mxu0 0.0
    %2079 = vmatprep.subr.mxu0 0.0
    %2080 = vmatpush2.msra.mxu0 0.0
    %2081 = vmatprep.subr.mxu0 0.0
    %2082 = vmatpush2.msra.mxu0 0.0
    %2083 = vmatprep.subr.mxu0 0.0
    %2084 = vmatpush2.msra.mxu0 0.0
    %2085 = vmatprep.subr.mxu0 0.0
    %2086 = vmatpush2.msra.mxu0 0.0
    %2087 = vmatprep.subr.mxu0 0.0
    %2088 = vmatpush2.msra.mxu0 0.0
    %2089 = vmatprep.mubr.f32.mxu0 0.0
    %2090 = vmatmul.mubr.f32.gmra.mxu0 %v2023
    %v2091 = vpop.f32.mrf.mxu0
    %v2092 = vadd.f32 %v2017, %v2091
    %v2093 = vpop.f32.mrf.mxu0
    %2094 = vdwg.mxu0
    %vm2095 = vcmask 25600
    %2096 = vst.msk [vmem:[#allocation6] sm:$0x3] %vm2095, %v2092
    // Predicated region
    $region50: #{gru_predictor_forward.1} parent=1 // pred_check
      _
    $region51: #{gru_predictor_forward.1} parent=1 // pred_check_branch
      %2098 = sbr.rel (0) target = $region53
    $region52: #{gru_predictor_forward.1} parent=1 // pred_region
      %s2100 = ssub.s32 32, 32
      %2101 = vsyncadd [#allocation5], %s2100
      %s2103 = sshll.u32 [#allocation6], 4
      %s2104 = int_to_ptr.vmem [resolvable:$true] %s2103
      %2106 = dma.vmem_to_hbm [thread:$0]  %s2104, 32, %s11, [#allocation5]
    $region53: #{gru_predictor_forward.1} parent=1 // pred_fallthru
      _
    // Predicated region
    $region54: #{gru_predictor_forward.1} parent=1 // pred_check
      _
    $region55: #{gru_predictor_forward.1} parent=1 // pred_check_branch
      %2108 = sbr.rel (0) target = $region57
    $region56: #{gru_predictor_forward.1} parent=1 // pred_region
      %2109 = dma.done [#allocation5], 32
    $region57: #{gru_predictor_forward.1} parent=1 // pred_fallthru
      _
    %2110 = vsyncpa [#allocation4], 1
    %2111 = vsyncpa [#allocation5], 1

</llo_original>
